<compile_context>
chip_gen: v7x
topology: tpu7x:2x2x1
jax: 0.10.0
libtpu: 0.0.40
codegen_flags: <defaults>
</compile_context>

<pallas_src>
import functools
import math

import jax
import jax.numpy as jnp
from jax.experimental import pallas as pl
from jax.experimental.pallas import tpu as pltpu


# ---------------------------------------------------------------------------
# Shared math helper (used by kernel and reference)
# ---------------------------------------------------------------------------
def _layer_norm(x, g, b, eps):
    mu = jnp.mean(x, axis=-1, keepdims=True)
    var = jnp.mean(jnp.square(x - mu), axis=-1, keepdims=True)
    return (x - mu) * jax.lax.rsqrt(var + eps) * g + b


# ---------------------------------------------------------------------------
# Kernel: one DETR encoder layer, one (batch, query-tile) grid step
# ---------------------------------------------------------------------------
def _encoder_layer_kernel(
    src_ref, pos_ref,
    wq_ref, bq_ref, wk_ref, bk_ref, wv_ref, bv_ref,
    wo_ref, bo_ref, g1_ref, be1_ref,
    wff1_ref, bff1_ref, wff2_ref, bff2_ref, g2_ref, be2_ref,
    gf_ref, bf_ref,
    *rest, num_heads, eps, q_tile, emit_attn, final_norm):
    if emit_attn:
        out_ref, attn_ref, k_scr, v_scr = rest
    else:
        out_ref, k_scr, v_scr = rest
        attn_ref = None

    qi = pl.program_id(1)
    S = src_ref.shape[1]
    D = src_ref.shape[2]
    H = num_heads
    e = D // H

    def split_heads(t):  # (rows, D) -> (H, rows, e) via static lane slices
        return jnp.stack([t[:, h * e:(h + 1) * e] for h in range(H)], axis=0)

    # ---- K/V projections: once per batch element, cached in VMEM scratch ----
    @pl.when(qi == 0)
    def _():
        x_all = src_ref[0].astype(jnp.float32)                        # (S, D)
        qk_all = (x_all + pos_ref[0].astype(jnp.float32)).astype(jnp.bfloat16)
        k = jnp.dot(qk_all, wk_ref[...],
                    preferred_element_type=jnp.float32) + bk_ref[...]
        v = jnp.dot(x_all.astype(jnp.bfloat16), wv_ref[...],
                    preferred_element_type=jnp.float32) + bv_ref[...]
        k_scr[...] = split_heads(k).astype(jnp.bfloat16)              # (H, S, e)
        v_scr[...] = split_heads(v).astype(jnp.bfloat16)

    # ---- query tile ----------------------------------------------------------
    row0 = pl.multiple_of(qi * q_tile, q_tile)
    x = src_ref[0, pl.ds(row0, q_tile), :].astype(jnp.float32)        # (Tq, D)
    p = pos_ref[0, pl.ds(row0, q_tile), :].astype(jnp.float32)

    # Q projection (1/sqrt(head_dim) folded into wq/bq in the wrapper).
    q = jnp.dot((x + p).astype(jnp.bfloat16), wq_ref[...],
                preferred_element_type=jnp.float32) + bq_ref[...]
    qh = split_heads(q).astype(jnp.bfloat16)                          # (H, Tq, e)

    # ---- attention (stable softmax, full keys resident) ----------------------
    s = jnp.einsum('hqe,hke->hqk', qh, k_scr[...],
                   preferred_element_type=jnp.float32)                # (H, Tq, S)
    s = s - jnp.max(s, axis=-1, keepdims=True)
    ex = jnp.exp(s)
    a = ex * pl.reciprocal(jnp.sum(ex, axis=-1, keepdims=True), approx=True)

    ctx = jnp.einsum('hqk,hke->hqe', a.astype(jnp.bfloat16), v_scr[...],
                     preferred_element_type=jnp.float32)              # (H, Tq, e)
    ctx2d = jnp.concatenate([ctx[h] for h in range(H)], axis=-1)      # (Tq, D)
    attn_out = jnp.dot(ctx2d.astype(jnp.bfloat16), wo_ref[...],
                       preferred_element_type=jnp.float32) + bo_ref[...]

    # ---- residual + LayerNorm 1 ----------------------------------------------
    y = _layer_norm(x + attn_out, g1_ref[...], be1_ref[...], eps)

    # ---- FFN: linear1 -> ReLU -> linear2 -------------------------------------
    h1 = jnp.dot(y.astype(jnp.bfloat16), wff1_ref[...],
                 preferred_element_type=jnp.float32) + bff1_ref[...]
    h1 = jnp.maximum(h1, 0.0)
    h2 = jnp.dot(h1.astype(jnp.bfloat16), wff2_ref[...],
                 preferred_element_type=jnp.float32) + bff2_ref[...]

    # ---- residual + LayerNorm 2 (+ fused final LayerNorm on the last layer) --
    z = _layer_norm(y + h2, g2_ref[...], be2_ref[...], eps)
    if final_norm:
        z = _layer_norm(z, gf_ref[...], bf_ref[...], eps)

    out_ref[0] = z.astype(out_ref.dtype)
    if emit_attn:
        # PyTorch MultiheadAttention default: weights averaged over heads.
        attn_ref[0] = (jnp.sum(a, axis=0) * (1.0 / H)).astype(attn_ref.dtype)


# ---------------------------------------------------------------------------
# Wrapper
# ---------------------------------------------------------------------------
def _encoder_layer_call(x, pos, kp, gf, bf, *, num_heads, eps, q_tile,
                        emit_attn, final_norm):
    """x, pos: (B, S, D). Returns (out (B,S,D), attn (B,S,S) or None)."""
    B, S, D = x.shape
    F_ = kp['w_ff1'].shape[1]
    e = D // num_heads
    n_q = S // q_tile

    kern = functools.partial(_encoder_layer_kernel, num_heads=num_heads,
                             eps=eps, q_tile=q_tile, emit_attn=emit_attn,
                             final_norm=final_norm)

    batched = lambda b, q: (b, 0, 0)   # full sequence resident (keys / values)
    const2 = lambda b, q: (0, 0)       # weights: constant block across grid

    in_specs = [
        pl.BlockSpec((1, S, D), batched),    # src
        pl.BlockSpec((1, S, D), batched),    # pos
        pl.BlockSpec((D, D), const2),        # w_q (scale folded)
        pl.BlockSpec((1, D), const2),        # b_q (scale folded)
        pl.BlockSpec((D, D), const2),        # w_k
        pl.BlockSpec((1, D), const2),        # b_k
        pl.BlockSpec((D, D), const2),        # w_v
        pl.BlockSpec((1, D), const2),        # b_v
        pl.BlockSpec((D, D), const2),        # w_o
        pl.BlockSpec((1, D), const2),        # b_o
        pl.BlockSpec((1, D), const2),        # gamma1
        pl.BlockSpec((1, D), const2),        # beta1
        pl.BlockSpec((D, F_), const2),       # w_ff1
        pl.BlockSpec((1, F_), const2),       # b_ff1
        pl.BlockSpec((F_, D), const2),       # w_ff2
        pl.BlockSpec((1, D), const2),        # b_ff2
        pl.BlockSpec((1, D), const2),        # gamma2
        pl.BlockSpec((1, D), const2),        # beta2
        pl.BlockSpec((1, D), const2),        # final-norm gamma (identity if unused)
        pl.BlockSpec((1, D), const2),        # final-norm beta
    ]

    out_shape = [jax.ShapeDtypeStruct((B, S, D), x.dtype)]
    out_specs = [pl.BlockSpec((1, q_tile, D), lambda b, q: (b, q, 0))]
    if emit_attn:
        out_shape.append(jax.ShapeDtypeStruct((B, S, S), jnp.float32))
        out_specs.append(pl.BlockSpec((1, q_tile, S), lambda b, q: (b, q, 0)))

    res = pl.pallas_call(
        kern,
        grid=(B, n_q),
        out_shape=tuple(out_shape),
        in_specs=in_specs,
        out_specs=tuple(out_specs),
        scratch_shapes=[pltpu.VMEM((num_heads, S, e), jnp.bfloat16),   # K cache
                        pltpu.VMEM((num_heads, S, e), jnp.bfloat16)],  # V cache
        compiler_params=pltpu.CompilerParams(
            # K/V scratch is carried across the query-tile axis -> "arbitrary";
            # the batch axis is independent -> "parallel" (megacore on v7x).
            dimension_semantics=("parallel", "arbitrary"),
            vmem_limit_bytes=48 * 1024 * 1024),
    )(x, pos,
      kp['w_q'], kp['b_q'], kp['w_k'], kp['b_k'], kp['w_v'], kp['b_v'],
      kp['w_o'], kp['b_o'], kp['g1'], kp['be1'],
      kp['w_ff1'], kp['b_ff1'], kp['w_ff2'], kp['b_ff2'], kp['g2'], kp['be2'],
      gf, bf)

    if emit_attn:
        out, attn = res
        return out, attn
    (out,) = res
    return out, None


def _prepare_layer_params(p, num_heads):
    """Natural-form params -> kernel layout (bf16 MXU weights, folded scale)."""
    D = p['w_q'].shape[0]
    F_ = p['w_ff1'].shape[1]
    e = D // num_heads
    scale = 1.0 / math.sqrt(e)
    f32 = jnp.float32
    bf16 = jnp.bfloat16
    return {
        'w_q': (p['w_q'] * scale).astype(bf16),
        'b_q': (p['b_q'] * scale).reshape(1, D).astype(f32),
        'w_k': p['w_k'].astype(bf16), 'b_k': p['b_k'].reshape(1, D).astype(f32),
        'w_v': p['w_v'].astype(bf16), 'b_v': p['b_v'].reshape(1, D).astype(f32),
        'w_o': p['w_o'].astype(bf16), 'b_o': p['b_o'].reshape(1, D).astype(f32),
        'g1': p['g1'].reshape(1, D).astype(f32),
        'be1': p['be1'].reshape(1, D).astype(f32),
        'w_ff1': p['w_ff1'].astype(bf16),
        'b_ff1': p['b_ff1'].reshape(1, F_).astype(f32),
        'w_ff2': p['w_ff2'].astype(bf16),
        'b_ff2': p['b_ff2'].reshape(1, D).astype(f32),
        'g2': p['g2'].reshape(1, D).astype(f32),
        'be2': p['be2'].reshape(1, D).astype(f32),
    }


def _pick_q_tile(S):
    for t in (256, 128, 64, 32, 16, 8):
        if S % t == 0:
            return t
    # TODO(synk): pad ragged S to a multiple of 128 (+ key masking) instead.
    return S


class DETRTransformerEncoder:
    """Mirror of the PyTorch module: stacked DETR encoder layers + opt. norm."""

    def __init__(self, layer_params, num_heads, norm_params=None, eps=1e-5,
                 q_tile=None):
        self.num_layers = len(layer_params)
        self.num_heads = num_heads
        self.eps = eps
        self.layer_params = [_prepare_layer_params(p, num_heads)
                             for p in layer_params]
        self.norm_params = norm_params
        self.q_tile = q_tile

    def __call__(self, src, mask=None, src_key_padding_mask=None, pos=None):
        if mask is not None or src_key_padding_mask is not None:
            # TODO(synk): attn_mask / key_padding_mask not implemented.
            raise NotImplementedError("masks are not supported")
        S, B, D = src.shape                            # PyTorch (seq, batch, dim)
        x = jnp.transpose(src, (1, 0, 2))              # (B, S, D), lane-dense D
        p = (jnp.zeros_like(x) if pos is None
             else jnp.transpose(pos, (1, 0, 2)))

        q_tile = self.q_tile if self.q_tile is not None else _pick_q_tile(S)
        if S % q_tile != 0:
            raise ValueError("sequence length must be a multiple of q_tile")

        if self.norm_params is not None:
            gf = self.norm_params['g'].reshape(1, D).astype(jnp.float32)
            bf = self.norm_params['b'].reshape(1, D).astype(jnp.float32)
        else:
            gf = jnp.ones((1, D), jnp.float32)
            bf = jnp.zeros((1, D), jnp.float32)

        attn = None
        for i, kp in enumerate(self.layer_params):
            last = (i == self.num_layers - 1)
            x, a = _encoder_layer_call(
                x, p, kp, gf, bf, num_heads=self.num_heads, eps=self.eps,
                q_tile=q_tile, emit_attn=last,
                final_norm=last and self.norm_params is not None)
            if last:
                attn = a
        return jnp.transpose(x, (1, 0, 2)), attn       # (S, B, D), (B, S, S)


# ---------------------------------------------------------------------------
# Parameter init + pure-JAX reference (mirrors the kernel's bf16 MXU operands)
# ---------------------------------------------------------------------------
def init_layer_params(key, d_model, dim_ff):
    ks = jax.random.split(key, 16)

    def w(k, fan_in, shape):
        return jax.random.normal(k, shape, jnp.float32) / (float(fan_in) ** 0.5)

    def b(k, shape):
        return 0.02 * jax.random.normal(k, shape, jnp.float32)

    return {
        'w_q': w(ks[0], d_model, (d_model, d_model)), 'b_q': b(ks[1], (d_model,)),
        'w_k': w(ks[2], d_model, (d_model, d_model)), 'b_k': b(ks[3], (d_model,)),
        'w_v': w(ks[4], d_model, (d_model, d_model)), 'b_v': b(ks[5], (d_model,)),
        'w_o': w(ks[6], d_model, (d_model, d_model)), 'b_o': b(ks[7], (d_model,)),
        'g1': 1.0 + 0.05 * jax.random.normal(ks[8], (d_model,), jnp.float32),
        'be1': b(ks[9], (d_model,)),
        'w_ff1': w(ks[10], d_model, (d_model, dim_ff)), 'b_ff1': b(ks[11], (dim_ff,)),
        'w_ff2': w(ks[12], dim_ff, (dim_ff, d_model)), 'b_ff2': b(ks[13], (d_model,)),
        'g2': 1.0 + 0.05 * jax.random.normal(ks[14], (d_model,), jnp.float32),
        'be2': b(ks[15], (d_model,)),
    }


def _ref_encoder_layer(x, pos, kp, num_heads, eps):
    B, S, D = x.shape
    e = D // num_heads
    bf16 = jnp.bfloat16

    def mm(a, w):  # bf16 operands, f32 accumulation (matches the kernel)
        return jnp.einsum('bsd,df->bsf', a.astype(bf16), w,
                          preferred_element_type=jnp.float32)

    qk_in = x + pos
    q = mm(qk_in, kp['w_q']) + kp['b_q']          # scale already folded into w_q
    k = mm(qk_in, kp['w_k']) + kp['b_k']
    v = mm(x, kp['w_v']) + kp['b_v']

    def heads(t):
        return t.reshape(B, S, num_heads, e).transpose(0, 2, 1, 3).astype(bf16)

    qh, kh, vh = heads(q), heads(k), heads(v)
    s = jnp.einsum('bhqe,bhke->bhqk', qh, kh, preferred_element_type=jnp.float32)
    a = jax.nn.softmax(s, axis=-1)
    ctx = jnp.einsum('bhqk,bhke->bhqe', a.astype(bf16), vh,
                     preferred_element_type=jnp.float32)
    ctx = ctx.transpose(0, 2, 1, 3).reshape(B, S, D)
    attn_out = mm(ctx, kp['w_o']) + kp['b_o']
    y = _layer_norm(x + attn_out, kp['g1'], kp['be1'], eps)
    h1 = jnp.maximum(mm(y, kp['w_ff1']) + kp['b_ff1'], 0.0)
    h2 = mm(h1, kp['w_ff2']) + kp['b_ff2']
    z = _layer_norm(y + h2, kp['g2'], kp['be2'], eps)
    return z, jnp.mean(a, axis=1)


def _ref_encoder(src, pos, prepared_layers, norm_g, norm_b, num_heads, eps=1e-5):
    x = jnp.transpose(src, (1, 0, 2))
    p = jnp.transpose(pos, (1, 0, 2))
    attn = None
    for kp in prepared_layers:
        x, attn = _ref_encoder_layer(x, p, kp, num_heads, eps)
    if norm_g is not None:
        x = _layer_norm(x, norm_g.reshape(1, -1), norm_b.reshape(1, -1), eps)
    return jnp.transpose(x, (1, 0, 2)), attn


# ---------------------------------------------------------------------------
# Demo / smoke test
# ---------------------------------------------------------------------------
if __name__ == "__main__":
    S, B, D, H, FF, L = 16, 2, 32, 4, 64, 2
    key = jax.random.PRNGKey(0)
    k_src, k_pos, k_norm, *k_layers = jax.random.split(key, 3 + L)

    src = jax.random.normal(k_src, (S, B, D), jnp.float32)
    pos = 0.1 * jax.random.normal(k_pos, (S, B, D), jnp.float32)

    layer_params = [init_layer_params(k, D, FF) for k in k_layers]
    kg, kb = jax.random.split(k_norm)
    norm_g = 1.0 + 0.05 * jax.random.normal(kg, (D,), jnp.float32)
    norm_b = 0.02 * jax.random.normal(kb, (D,), jnp.float32)

    # q_tile=8 -> two query tiles per batch element: exercises the K/V-scratch
    # caching path (pl.when(qi==0)) in addition to the single-tile path.
    enc = DETRTransformerEncoder(layer_params, num_heads=H,
                                 norm_params={'g': norm_g, 'b': norm_b},
                                 q_tile=8)

    out, attn = enc(src, pos=pos)
    out = jax.block_until_ready(out)
    attn = jax.block_until_ready(attn)

    assert out.shape == (S, B, D) and out.dtype == src.dtype
    assert attn.shape == (B, S, S)

    ref_out, ref_attn = _ref_encoder(src, pos, enc.layer_params,
                                     norm_g, norm_b, H)
    assert bool(jnp.allclose(out, ref_out, atol=2e-2, rtol=2e-2)), \
        "encoder output mismatch vs reference"
    assert bool(jnp.allclose(attn, ref_attn, atol=2e-2, rtol=2e-2)), \
        "attention weights mismatch vs reference"
    assert bool(jnp.allclose(jnp.sum(attn, axis=-1), 1.0, atol=5e-3)), \
        "attention rows must sum to 1"

    print("KERNEL_OK")
</pallas_src>

<mosaic_0001>
module attributes {stable_mosaic.version = 11 : i64} {
  func.func @_encoder_layer_kernel(%arg0: i32, %arg1: i32, %arg2: memref<1x16x32xf32, #tpu.memory_space<vmem>>, %arg3: memref<1x16x32xf32, #tpu.memory_space<vmem>>, %arg4: memref<32x32xbf16, #tpu.memory_space<vmem>>, %arg5: memref<1x32xf32, #tpu.memory_space<vmem>>, %arg6: memref<32x32xbf16, #tpu.memory_space<vmem>>, %arg7: memref<1x32xf32, #tpu.memory_space<vmem>>, %arg8: memref<32x32xbf16, #tpu.memory_space<vmem>>, %arg9: memref<1x32xf32, #tpu.memory_space<vmem>>, %arg10: memref<32x32xbf16, #tpu.memory_space<vmem>>, %arg11: memref<1x32xf32, #tpu.memory_space<vmem>>, %arg12: memref<1x32xf32, #tpu.memory_space<vmem>>, %arg13: memref<1x32xf32, #tpu.memory_space<vmem>>, %arg14: memref<32x64xbf16, #tpu.memory_space<vmem>>, %arg15: memref<1x64xf32, #tpu.memory_space<vmem>>, %arg16: memref<64x32xbf16, #tpu.memory_space<vmem>>, %arg17: memref<1x32xf32, #tpu.memory_space<vmem>>, %arg18: memref<1x32xf32, #tpu.memory_space<vmem>>, %arg19: memref<1x32xf32, #tpu.memory_space<vmem>>, %arg20: memref<1x32xf32, #tpu.memory_space<vmem>>, %arg21: memref<1x32xf32, #tpu.memory_space<vmem>>, %arg22: memref<1x8x32xf32, #tpu.memory_space<vmem>>, %arg23: memref<4x16x8xbf16, #tpu.memory_space<vmem>>, %arg24: memref<4x16x8xbf16, #tpu.memory_space<vmem>>) attributes {dimension_semantics = [#tpu.dimension_semantics<parallel>, #tpu.dimension_semantics<arbitrary>], iteration_bounds = array<i64: 2, 2>, scalar_prefetch = 0 : i64, scratch_operands = 2 : i64, tpu.core_type = #tpu.core_type<tc>, window_params = [{transform_indices = @transform_0, window_bounds = array<i64: 1, 16, 32>}, {transform_indices = @transform_1, window_bounds = array<i64: 1, 16, 32>}, {pipeline_mode = #tpu.pipeline_mode<synchronous>, transform_indices = @transform_2, window_bounds = array<i64: 32, 32>}, {pipeline_mode = #tpu.pipeline_mode<synchronous>, transform_indices = @transform_3, window_bounds = array<i64: 1, 32>}, {pipeline_mode = #tpu.pipeline_mode<synchronous>, transform_indices = @transform_4, window_bounds = array<i64: 32, 32>}, {pipeline_mode = #tpu.pipeline_mode<synchronous>, transform_indices = @transform_5, window_bounds = array<i64: 1, 32>}, {pipeline_mode = #tpu.pipeline_mode<synchronous>, transform_indices = @transform_6, window_bounds = array<i64: 32, 32>}, {pipeline_mode = #tpu.pipeline_mode<synchronous>, transform_indices = @transform_7, window_bounds = array<i64: 1, 32>}, {pipeline_mode = #tpu.pipeline_mode<synchronous>, transform_indices = @transform_8, window_bounds = array<i64: 32, 32>}, {pipeline_mode = #tpu.pipeline_mode<synchronous>, transform_indices = @transform_9, window_bounds = array<i64: 1, 32>}, {pipeline_mode = #tpu.pipeline_mode<synchronous>, transform_indices = @transform_10, window_bounds = array<i64: 1, 32>}, {pipeline_mode = #tpu.pipeline_mode<synchronous>, transform_indices = @transform_11, window_bounds = array<i64: 1, 32>}, {pipeline_mode = #tpu.pipeline_mode<synchronous>, transform_indices = @transform_12, window_bounds = array<i64: 32, 64>}, {pipeline_mode = #tpu.pipeline_mode<synchronous>, transform_indices = @transform_13, window_bounds = array<i64: 1, 64>}, {pipeline_mode = #tpu.pipeline_mode<synchronous>, transform_indices = @transform_14, window_bounds = array<i64: 64, 32>}, {pipeline_mode = #tpu.pipeline_mode<synchronous>, transform_indices = @transform_15, window_bounds = array<i64: 1, 32>}, {pipeline_mode = #tpu.pipeline_mode<synchronous>, transform_indices = @transform_16, window_bounds = array<i64: 1, 32>}, {pipeline_mode = #tpu.pipeline_mode<synchronous>, transform_indices = @transform_17, window_bounds = array<i64: 1, 32>}, {pipeline_mode = #tpu.pipeline_mode<synchronous>, transform_indices = @transform_18, window_bounds = array<i64: 1, 32>}, {pipeline_mode = #tpu.pipeline_mode<synchronous>, transform_indices = @transform_19, window_bounds = array<i64: 1, 32>}, {transform_indices = @transform_20, window_bounds = array<i64: 1, 8, 32>}]} {
    %c0_i32 = arith.constant 0 : i32
    %0 = arith.cmpi eq, %arg1, %c0_i32 : i32
    %1 = arith.extui %0 : i1 to i32
    %c0_i32_0 = arith.constant 0 : i32
    %2 = arith.cmpi ne, %1, %c0_i32_0 : i32
    scf.if %2 {
      %c0_55 = arith.constant 0 : index
      %c0_56 = arith.constant 0 : index
      %c0_57 = arith.constant 0 : index
      %125 = vector.load %arg2[%c0_55, %c0_56, %c0_57] : memref<1x16x32xf32, #tpu.memory_space<vmem>>, vector<1x16x32xf32>
      %126 = vector.shape_cast %125 : vector<1x16x32xf32> to vector<16x32xf32>
      %c0_58 = arith.constant 0 : index
      %c0_59 = arith.constant 0 : index
      %c0_60 = arith.constant 0 : index
      %127 = vector.load %arg3[%c0_58, %c0_59, %c0_60] : memref<1x16x32xf32, #tpu.memory_space<vmem>>, vector<1x16x32xf32>
      %128 = vector.shape_cast %127 : vector<1x16x32xf32> to vector<16x32xf32>
      %129 = arith.addf %126, %128 : vector<16x32xf32>
      %130 = arith.truncf %129 : vector<16x32xf32> to vector<16x32xbf16>
      %c0_61 = arith.constant 0 : index
      %c0_62 = arith.constant 0 : index
      %131 = vector.load %arg6[%c0_61, %c0_62] : memref<32x32xbf16, #tpu.memory_space<vmem>>, vector<32x32xbf16>
      %cst_63 = arith.constant dense<0.000000e+00> : vector<16x32xf32>
      %132 = tpu.matmul %130, %131, %cst_63 {dimension_numbers = #tpu.dot_dimension_numbers<[1], [0], [0], [1], [0, 0, 1, 1], [], []>} : vector<16x32xbf16>, vector<32x32xbf16>, vector<16x32xf32> -> vector<16x32xf32>
      %c0_64 = arith.constant 0 : index
      %c0_65 = arith.constant 0 : index
      %133 = vector.load %arg7[%c0_64, %c0_65] : memref<1x32xf32, #tpu.memory_space<vmem>>, vector<1x32xf32>
      %134 = vector.broadcast %133 : vector<1x32xf32> to vector<16x32xf32>
      %135 = arith.addf %132, %134 : vector<16x32xf32>
      %136 = arith.truncf %126 : vector<16x32xf32> to vector<16x32xbf16>
      %c0_66 = arith.constant 0 : index
      %c0_67 = arith.constant 0 : index
      %137 = vector.load %arg8[%c0_66, %c0_67] : memref<32x32xbf16, #tpu.memory_space<vmem>>, vector<32x32xbf16>
      %cst_68 = arith.constant dense<0.000000e+00> : vector<16x32xf32>
      %138 = tpu.matmul %136, %137, %cst_68 {dimension_numbers = #tpu.dot_dimension_numbers<[1], [0], [0], [1], [0, 0, 1, 1], [], []>} : vector<16x32xbf16>, vector<32x32xbf16>, vector<16x32xf32> -> vector<16x32xf32>
      %c0_69 = arith.constant 0 : index
      %c0_70 = arith.constant 0 : index
      %139 = vector.load %arg9[%c0_69, %c0_70] : memref<1x32xf32, #tpu.memory_space<vmem>>, vector<1x32xf32>
      %140 = vector.broadcast %139 : vector<1x32xf32> to vector<16x32xf32>
      %141 = arith.addf %138, %140 : vector<16x32xf32>
      %142 = vector.extract_strided_slice %135 {offsets = [0, 0], sizes = [16, 8], strides = [1, 1]} : vector<16x32xf32> to vector<16x8xf32>
      %143 = vector.extract_strided_slice %135 {offsets = [0, 8], sizes = [16, 8], strides = [1, 1]} : vector<16x32xf32> to vector<16x8xf32>
      %144 = vector.extract_strided_slice %135 {offsets = [0, 16], sizes = [16, 8], strides = [1, 1]} : vector<16x32xf32> to vector<16x8xf32>
      %145 = vector.extract_strided_slice %135 {offsets = [0, 24], sizes = [16, 8], strides = [1, 1]} : vector<16x32xf32> to vector<16x8xf32>
      %146 = vector.shape_cast %142 : vector<16x8xf32> to vector<1x16x8xf32>
      %147 = vector.shape_cast %143 : vector<16x8xf32> to vector<1x16x8xf32>
      %148 = vector.shape_cast %144 : vector<16x8xf32> to vector<1x16x8xf32>
      %149 = vector.shape_cast %145 : vector<16x8xf32> to vector<1x16x8xf32>
      %150 = tpu.concatenate %146, %147, %148, %149 in 0 : vector<1x16x8xf32>, vector<1x16x8xf32>, vector<1x16x8xf32>, vector<1x16x8xf32> -> vector<4x16x8xf32>
      %151 = arith.truncf %150 : vector<4x16x8xf32> to vector<4x16x8xbf16>
      %c0_71 = arith.constant 0 : index
      %c0_72 = arith.constant 0 : index
      %c0_73 = arith.constant 0 : index
      %152 = vector.load %arg23[%c0_71, %c0_72, %c0_73] : memref<4x16x8xbf16, #tpu.memory_space<vmem>>, vector<4x16x8xbf16>
      tpu.vector_store %arg23[%c0_71, %c0_72, %c0_73], %151 {strides = array<i32>} : memref<4x16x8xbf16, #tpu.memory_space<vmem>>, vector<4x16x8xbf16>,
      %153 = vector.extract_strided_slice %141 {offsets = [0, 0], sizes = [16, 8], strides = [1, 1]} : vector<16x32xf32> to vector<16x8xf32>
      %154 = vector.extract_strided_slice %141 {offsets = [0, 8], sizes = [16, 8], strides = [1, 1]} : vector<16x32xf32> to vector<16x8xf32>
      %155 = vector.extract_strided_slice %141 {offsets = [0, 16], sizes = [16, 8], strides = [1, 1]} : vector<16x32xf32> to vector<16x8xf32>
      %156 = vector.extract_strided_slice %141 {offsets = [0, 24], sizes = [16, 8], strides = [1, 1]} : vector<16x32xf32> to vector<16x8xf32>
      %157 = vector.shape_cast %153 : vector<16x8xf32> to vector<1x16x8xf32>
      %158 = vector.shape_cast %154 : vector<16x8xf32> to vector<1x16x8xf32>
      %159 = vector.shape_cast %155 : vector<16x8xf32> to vector<1x16x8xf32>
      %160 = vector.shape_cast %156 : vector<16x8xf32> to vector<1x16x8xf32>
      %161 = tpu.concatenate %157, %158, %159, %160 in 0 : vector<1x16x8xf32>, vector<1x16x8xf32>, vector<1x16x8xf32>, vector<1x16x8xf32> -> vector<4x16x8xf32>
      %162 = arith.truncf %161 : vector<4x16x8xf32> to vector<4x16x8xbf16>
      %c0_74 = arith.constant 0 : index
      %c0_75 = arith.constant 0 : index
      %c0_76 = arith.constant 0 : index
      %163 = vector.load %arg24[%c0_74, %c0_75, %c0_76] : memref<4x16x8xbf16, #tpu.memory_space<vmem>>, vector<4x16x8xbf16>
      tpu.vector_store %arg24[%c0_74, %c0_75, %c0_76], %162 {strides = array<i32>} : memref<4x16x8xbf16, #tpu.memory_space<vmem>>, vector<4x16x8xbf16>,
    } else {
    }
    %c8_i32 = arith.constant 8 : i32
    %3 = arith.muli %arg1, %c8_i32 : i32
    %4 = tpu.assume_multiple %3, 8 : i32
    %c0 = arith.constant 0 : index
    %5 = arith.index_cast %4 : i32 to index
    %c0_1 = arith.constant 0 : index
    %6 = vector.load %arg2[%c0, %5, %c0_1] : memref<1x16x32xf32, #tpu.memory_space<vmem>>, vector<1x8x32xf32>
    %7 = vector.shape_cast %6 : vector<1x8x32xf32> to vector<8x32xf32>
    %c0_2 = arith.constant 0 : index
    %8 = arith.index_cast %4 : i32 to index
    %c0_3 = arith.constant 0 : index
    %9 = vector.load %arg3[%c0_2, %8, %c0_3] : memref<1x16x32xf32, #tpu.memory_space<vmem>>, vector<1x8x32xf32>
    %10 = vector.shape_cast %9 : vector<1x8x32xf32> to vector<8x32xf32>
    %11 = arith.addf %7, %10 : vector<8x32xf32>
    %12 = arith.truncf %11 : vector<8x32xf32> to vector<8x32xbf16>
    %c0_4 = arith.constant 0 : index
    %c0_5 = arith.constant 0 : index
    %13 = vector.load %arg4[%c0_4, %c0_5] : memref<32x32xbf16, #tpu.memory_space<vmem>>, vector<32x32xbf16>
    %cst = arith.constant dense<0.000000e+00> : vector<8x32xf32>
    %14 = tpu.matmul %12, %13, %cst {dimension_numbers = #tpu.dot_dimension_numbers<[1], [0], [0], [1], [0, 0, 1, 1], [], []>} : vector<8x32xbf16>, vector<32x32xbf16>, vector<8x32xf32> -> vector<8x32xf32>
    %c0_6 = arith.constant 0 : index
    %c0_7 = arith.constant 0 : index
    %15 = vector.load %arg5[%c0_6, %c0_7] : memref<1x32xf32, #tpu.memory_space<vmem>>, vector<1x32xf32>
    %16 = vector.broadcast %15 : vector<1x32xf32> to vector<8x32xf32>
    %17 = arith.addf %14, %16 : vector<8x32xf32>
    %18 = vector.extract_strided_slice %17 {offsets = [0, 0], sizes = [8, 8], strides = [1, 1]} : vector<8x32xf32> to vector<8x8xf32>
    %19 = vector.extract_strided_slice %17 {offsets = [0, 8], sizes = [8, 8], strides = [1, 1]} : vector<8x32xf32> to vector<8x8xf32>
    %20 = vector.extract_strided_slice %17 {offsets = [0, 16], sizes = [8, 8], strides = [1, 1]} : vector<8x32xf32> to vector<8x8xf32>
    %21 = vector.extract_strided_slice %17 {offsets = [0, 24], sizes = [8, 8], strides = [1, 1]} : vector<8x32xf32> to vector<8x8xf32>
    %22 = vector.shape_cast %18 : vector<8x8xf32> to vector<1x8x8xf32>
    %23 = vector.shape_cast %19 : vector<8x8xf32> to vector<1x8x8xf32>
    %24 = vector.shape_cast %20 : vector<8x8xf32> to vector<1x8x8xf32>
    %25 = vector.shape_cast %21 : vector<8x8xf32> to vector<1x8x8xf32>
    %26 = tpu.concatenate %22, %23, %24, %25 in 0 : vector<1x8x8xf32>, vector<1x8x8xf32>, vector<1x8x8xf32>, vector<1x8x8xf32> -> vector<4x8x8xf32>
    %27 = arith.truncf %26 : vector<4x8x8xf32> to vector<4x8x8xbf16>
    %c0_8 = arith.constant 0 : index
    %c0_9 = arith.constant 0 : index
    %c0_10 = arith.constant 0 : index
    %28 = vector.load %arg23[%c0_8, %c0_9, %c0_10] : memref<4x16x8xbf16, #tpu.memory_space<vmem>>, vector<4x16x8xbf16>
    "tpu.trace_start"() <{level = 10 : i32, message = "hqe,hke->hqk"}> : () -> ()
    %cst_11 = arith.constant dense<0.000000e+00> : vector<4x8x16xf32>
    %29 = tpu.matmul %27, %28, %cst_11 {dimension_numbers = #tpu.dot_dimension_numbers<[2], [2], [1], [1], [0, 0, 0, 1, 1, 1], [0], [0]>} : vector<4x8x8xbf16>, vector<4x16x8xbf16>, vector<4x8x16xf32> -> vector<4x8x16xf32>
    "tpu.trace_stop"() : () -> ()
    %cst_12 = arith.constant dense<0xFF800000> : vector<4x8xf32>
    %30 = vector.multi_reduction <maximumf>, %29, %cst_12 [2] : vector<4x8x16xf32> to vector<4x8xf32>
    %31 = vector.shape_cast %30 : vector<4x8xf32> to vector<4x8x1xf32>
    %32 = vector.broadcast %31 : vector<4x8x1xf32> to vector<4x8x16xf32>
    %33 = arith.subf %29, %32 : vector<4x8x16xf32>
    %34 = math.exp %33 : vector<4x8x16xf32>
    %cst_13 = arith.constant dense<0.000000e+00> : vector<4x8xf32>
    %35 = vector.multi_reduction <add>, %34, %cst_13 [2] : vector<4x8x16xf32> to vector<4x8xf32>
    %36 = vector.shape_cast %35 : vector<4x8xf32> to vector<4x8x1xf32>
    %37 = tpu.reciprocal %36 {approx = true} : vector<4x8x1xf32> -> vector<4x8x1xf32>
    %38 = vector.broadcast %37 : vector<4x8x1xf32> to vector<4x8x16xf32>
    %39 = arith.mulf %34, %38 : vector<4x8x16xf32>
    %40 = arith.truncf %39 : vector<4x8x16xf32> to vector<4x8x16xbf16>
    %c0_14 = arith.constant 0 : index
    %c0_15 = arith.constant 0 : index
    %c0_16 = arith.constant 0 : index
    %41 = vector.load %arg24[%c0_14, %c0_15, %c0_16] : memref<4x16x8xbf16, #tpu.memory_space<vmem>>, vector<4x16x8xbf16>
    "tpu.trace_start"() <{level = 10 : i32, message = "hqk,hke->hqe"}> : () -> ()
    %cst_17 = arith.constant dense<0.000000e+00> : vector<4x8x8xf32>
    %42 = tpu.matmul %40, %41, %cst_17 {dimension_numbers = #tpu.dot_dimension_numbers<[2], [1], [1], [2], [0, 0, 0, 1, 1, 2], [0], [0]>} : vector<4x8x16xbf16>, vector<4x16x8xbf16>, vector<4x8x8xf32> -> vector<4x8x8xf32>
    "tpu.trace_stop"() : () -> ()
    %43 = vector.extract_strided_slice %42 {offsets = [0, 0, 0], sizes = [1, 8, 8], strides = [1, 1, 1]} : vector<4x8x8xf32> to vector<1x8x8xf32>
    %44 = vector.shape_cast %43 : vector<1x8x8xf32> to vector<8x8xf32>
    %45 = vector.extract_strided_slice %42 {offsets = [1, 0, 0], sizes = [1, 8, 8], strides = [1, 1, 1]} : vector<4x8x8xf32> to vector<1x8x8xf32>
    %46 = vector.shape_cast %45 : vector<1x8x8xf32> to vector<8x8xf32>
    %47 = vector.extract_strided_slice %42 {offsets = [2, 0, 0], sizes = [1, 8, 8], strides = [1, 1, 1]} : vector<4x8x8xf32> to vector<1x8x8xf32>
    %48 = vector.shape_cast %47 : vector<1x8x8xf32> to vector<8x8xf32>
    %49 = vector.extract_strided_slice %42 {offsets = [3, 0, 0], sizes = [1, 8, 8], strides = [1, 1, 1]} : vector<4x8x8xf32> to vector<1x8x8xf32>
    %50 = vector.shape_cast %49 : vector<1x8x8xf32> to vector<8x8xf32>
    %51 = tpu.concatenate %44, %46, %48, %50 in 1 : vector<8x8xf32>, vector<8x8xf32>, vector<8x8xf32>, vector<8x8xf32> -> vector<8x32xf32>
    %52 = arith.truncf %51 : vector<8x32xf32> to vector<8x32xbf16>
    %c0_18 = arith.constant 0 : index
    %c0_19 = arith.constant 0 : index
    %53 = vector.load %arg10[%c0_18, %c0_19] : memref<32x32xbf16, #tpu.memory_space<vmem>>, vector<32x32xbf16>
    %cst_20 = arith.constant dense<0.000000e+00> : vector<8x32xf32>
    %54 = tpu.matmul %52, %53, %cst_20 {dimension_numbers = #tpu.dot_dimension_numbers<[1], [0], [0], [1], [0, 0, 1, 1], [], []>} : vector<8x32xbf16>, vector<32x32xbf16>, vector<8x32xf32> -> vector<8x32xf32>
    %c0_21 = arith.constant 0 : index
    %c0_22 = arith.constant 0 : index
    %55 = vector.load %arg11[%c0_21, %c0_22] : memref<1x32xf32, #tpu.memory_space<vmem>>, vector<1x32xf32>
    %56 = vector.broadcast %55 : vector<1x32xf32> to vector<8x32xf32>
    %57 = arith.addf %54, %56 : vector<8x32xf32>
    %58 = arith.addf %7, %57 : vector<8x32xf32>
    %c0_23 = arith.constant 0 : index
    %c0_24 = arith.constant 0 : index
    %59 = vector.load %arg12[%c0_23, %c0_24] : memref<1x32xf32, #tpu.memory_space<vmem>>, vector<1x32xf32>
    %c0_25 = arith.constant 0 : index
    %c0_26 = arith.constant 0 : index
    %60 = vector.load %arg13[%c0_25, %c0_26] : memref<1x32xf32, #tpu.memory_space<vmem>>, vector<1x32xf32>
    %cst_27 = arith.constant dense<0.000000e+00> : vector<8xf32>
    %61 = vector.multi_reduction <add>, %58, %cst_27 [1] : vector<8x32xf32> to vector<8xf32>
    %62 = vector.shape_cast %61 : vector<8xf32> to vector<8x1xf32>
    %cst_28 = arith.constant 3.200000e+01 : f32
    %63 = vector.broadcast %cst_28 : f32 to vector<8x1xf32>
    %64 = arith.divf %62, %63 : vector<8x1xf32>
    %65 = vector.broadcast %64 : vector<8x1xf32> to vector<8x32xf32>
    %66 = arith.subf %58, %65 : vector<8x32xf32>
    %67 = arith.mulf %66, %66 : vector<8x32xf32>
    %cst_29 = arith.constant dense<0.000000e+00> : vector<8xf32>
    %68 = vector.multi_reduction <add>, %67, %cst_29 [1] : vector<8x32xf32> to vector<8xf32>
    %69 = vector.shape_cast %68 : vector<8xf32> to vector<8x1xf32>
    %cst_30 = arith.constant 3.200000e+01 : f32
    %70 = vector.broadcast %cst_30 : f32 to vector<8x1xf32>
    %71 = arith.divf %69, %70 : vector<8x1xf32>
    %72 = vector.broadcast %64 : vector<8x1xf32> to vector<8x32xf32>
    %73 = arith.subf %58, %72 : vector<8x32xf32>
    %cst_31 = arith.constant 9.99999974E-6 : f32
    %74 = vector.broadcast %cst_31 : f32 to vector<8x1xf32>
    %75 = arith.addf %71, %74 : vector<8x1xf32>
    %76 = math.rsqrt %75 : vector<8x1xf32>
    %77 = vector.broadcast %76 : vector<8x1xf32> to vector<8x32xf32>
    %78 = arith.mulf %73, %77 : vector<8x32xf32>
    %79 = vector.broadcast %59 : vector<1x32xf32> to vector<8x32xf32>
    %80 = arith.mulf %78, %79 : vector<8x32xf32>
    %81 = vector.broadcast %60 : vector<1x32xf32> to vector<8x32xf32>
    %82 = arith.addf %80, %81 : vector<8x32xf32>
    %83 = arith.truncf %82 : vector<8x32xf32> to vector<8x32xbf16>
    %c0_32 = arith.constant 0 : index
    %c0_33 = arith.constant 0 : index
    %84 = vector.load %arg14[%c0_32, %c0_33] : memref<32x64xbf16, #tpu.memory_space<vmem>>, vector<32x64xbf16>
    %cst_34 = arith.constant dense<0.000000e+00> : vector<8x64xf32>
    %85 = tpu.matmul %83, %84, %cst_34 {dimension_numbers = #tpu.dot_dimension_numbers<[1], [0], [0], [1], [0, 0, 1, 1], [], []>} : vector<8x32xbf16>, vector<32x64xbf16>, vector<8x64xf32> -> vector<8x64xf32>
    %c0_35 = arith.constant 0 : index
    %c0_36 = arith.constant 0 : index
    %86 = vector.load %arg15[%c0_35, %c0_36] : memref<1x64xf32, #tpu.memory_space<vmem>>, vector<1x64xf32>
    %87 = vector.broadcast %86 : vector<1x64xf32> to vector<8x64xf32>
    %88 = arith.addf %85, %87 : vector<8x64xf32>
    %cst_37 = arith.constant 0.000000e+00 : f32
    %89 = vector.broadcast %cst_37 : f32 to vector<8x64xf32>
    %90 = arith.maximumf %88, %89 : vector<8x64xf32>
    %91 = arith.truncf %90 : vector<8x64xf32> to vector<8x64xbf16>
    %c0_38 = arith.constant 0 : index
    %c0_39 = arith.constant 0 : index
    %92 = vector.load %arg16[%c0_38, %c0_39] : memref<64x32xbf16, #tpu.memory_space<vmem>>, vector<64x32xbf16>
    %cst_40 = arith.constant dense<0.000000e+00> : vector<8x32xf32>
    %93 = tpu.matmul %91, %92, %cst_40 {dimension_numbers = #tpu.dot_dimension_numbers<[1], [0], [0], [1], [0, 0, 1, 1], [], []>} : vector<8x64xbf16>, vector<64x32xbf16>, vector<8x32xf32> -> vector<8x32xf32>
    %c0_41 = arith.constant 0 : index
    %c0_42 = arith.constant 0 : index
    %94 = vector.load %arg17[%c0_41, %c0_42] : memref<1x32xf32, #tpu.memory_space<vmem>>, vector<1x32xf32>
    %95 = vector.broadcast %94 : vector<1x32xf32> to vector<8x32xf32>
    %96 = arith.addf %93, %95 : vector<8x32xf32>
    %97 = arith.addf %82, %96 : vector<8x32xf32>
    %c0_43 = arith.constant 0 : index
    %c0_44 = arith.constant 0 : index
    %98 = vector.load %arg18[%c0_43, %c0_44] : memref<1x32xf32, #tpu.memory_space<vmem>>, vector<1x32xf32>
    %c0_45 = arith.constant 0 : index
    %c0_46 = arith.constant 0 : index
    %99 = vector.load %arg19[%c0_45, %c0_46] : memref<1x32xf32, #tpu.memory_space<vmem>>, vector<1x32xf32>
    %cst_47 = arith.constant dense<0.000000e+00> : vector<8xf32>
    %100 = vector.multi_reduction <add>, %97, %cst_47 [1] : vector<8x32xf32> to vector<8xf32>
    %101 = vector.shape_cast %100 : vector<8xf32> to vector<8x1xf32>
    %cst_48 = arith.constant 3.200000e+01 : f32
    %102 = vector.broadcast %cst_48 : f32 to vector<8x1xf32>
    %103 = arith.divf %101, %102 : vector<8x1xf32>
    %104 = vector.broadcast %103 : vector<8x1xf32> to vector<8x32xf32>
    %105 = arith.subf %97, %104 : vector<8x32xf32>
    %106 = arith.mulf %105, %105 : vector<8x32xf32>
    %cst_49 = arith.constant dense<0.000000e+00> : vector<8xf32>
    %107 = vector.multi_reduction <add>, %106, %cst_49 [1] : vector<8x32xf32> to vector<8xf32>
    %108 = vector.shape_cast %107 : vector<8xf32> to vector<8x1xf32>
    %cst_50 = arith.constant 3.200000e+01 : f32
    %109 = vector.broadcast %cst_50 : f32 to vector<8x1xf32>
    %110 = arith.divf %108, %109 : vector<8x1xf32>
    %111 = vector.broadcast %103 : vector<8x1xf32> to vector<8x32xf32>
    %112 = arith.subf %97, %111 : vector<8x32xf32>
    %cst_51 = arith.constant 9.99999974E-6 : f32
    %113 = vector.broadcast %cst_51 : f32 to vector<8x1xf32>
    %114 = arith.addf %110, %113 : vector<8x1xf32>
    %115 = math.rsqrt %114 : vector<8x1xf32>
    %116 = vector.broadcast %115 : vector<8x1xf32> to vector<8x32xf32>
    %117 = arith.mulf %112, %116 : vector<8x32xf32>
    %118 = vector.broadcast %98 : vector<1x32xf32> to vector<8x32xf32>
    %119 = arith.mulf %117, %118 : vector<8x32xf32>
    %120 = vector.broadcast %99 : vector<1x32xf32> to vector<8x32xf32>
    %121 = arith.addf %119, %120 : vector<8x32xf32>
    %c0_52 = arith.constant 0 : index
    %c0_53 = arith.constant 0 : index
    %c0_54 = arith.constant 0 : index
    %122 = vector.load %arg22[%c0_52, %c0_53, %c0_54] : memref<1x8x32xf32, #tpu.memory_space<vmem>>, vector<1x8x32xf32>
    %123 = vector.shape_cast %122 : vector<1x8x32xf32> to vector<8x32xf32>
    %124 = vector.shape_cast %121 : vector<8x32xf32> to vector<1x8x32xf32>
    tpu.vector_store %arg22[%c0_52, %c0_53, %c0_54], %124 {strides = array<i32>} : memref<1x8x32xf32, #tpu.memory_space<vmem>>, vector<1x8x32xf32>,
    return
  }
  func.func @transform_0(%arg0: i32, %arg1: i32) -> (i32, i32, i32) {
    %c0_i32 = arith.constant 0 : i32
    %c0_i32_0 = arith.constant 0 : i32
    %c0_i32_1 = arith.constant 0 : i32
    return %arg0, %c0_i32, %c0_i32_0 : i32, i32, i32
  }
  func.func @transform_1(%arg0: i32, %arg1: i32) -> (i32, i32, i32) {
    %c0_i32 = arith.constant 0 : i32
    %c0_i32_0 = arith.constant 0 : i32
    %c0_i32_1 = arith.constant 0 : i32
    return %arg0, %c0_i32, %c0_i32_0 : i32, i32, i32
  }
  func.func @transform_2(%arg0: i32, %arg1: i32) -> (i32, i32) {
    %c0_i32 = arith.constant 0 : i32
    %c0_i32_0 = arith.constant 0 : i32
    %c0_i32_1 = arith.constant 0 : i32
    return %c0_i32, %c0_i32_0 : i32, i32
  }
  func.func @transform_3(%arg0: i32, %arg1: i32) -> (i32, i32) {
    %c0_i32 = arith.constant 0 : i32
    %c0_i32_0 = arith.constant 0 : i32
    %c0_i32_1 = arith.constant 0 : i32
    return %c0_i32, %c0_i32_0 : i32, i32
  }
  func.func @transform_4(%arg0: i32, %arg1: i32) -> (i32, i32) {
    %c0_i32 = arith.constant 0 : i32
    %c0_i32_0 = arith.constant 0 : i32
    %c0_i32_1 = arith.constant 0 : i32
    return %c0_i32, %c0_i32_0 : i32, i32
  }
  func.func @transform_5(%arg0: i32, %arg1: i32) -> (i32, i32) {
    %c0_i32 = arith.constant 0 : i32
    %c0_i32_0 = arith.constant 0 : i32
    %c0_i32_1 = arith.constant 0 : i32
    return %c0_i32, %c0_i32_0 : i32, i32
  }
  func.func @transform_6(%arg0: i32, %arg1: i32) -> (i32, i32) {
    %c0_i32 = arith.constant 0 : i32
    %c0_i32_0 = arith.constant 0 : i32
    %c0_i32_1 = arith.constant 0 : i32
    return %c0_i32, %c0_i32_0 : i32, i32
  }
  func.func @transform_7(%arg0: i32, %arg1: i32) -> (i32, i32) {
    %c0_i32 = arith.constant 0 : i32
    %c0_i32_0 = arith.constant 0 : i32
    %c0_i32_1 = arith.constant 0 : i32
    return %c0_i32, %c0_i32_0 : i32, i32
  }
  func.func @transform_8(%arg0: i32, %arg1: i32) -> (i32, i32) {
    %c0_i32 = arith.constant 0 : i32
    %c0_i32_0 = arith.constant 0 : i32
    %c0_i32_1 = arith.constant 0 : i32
    return %c0_i32, %c0_i32_0 : i32, i32
  }
  func.func @transform_9(%arg0: i32, %arg1: i32) -> (i32, i32) {
    %c0_i32 = arith.constant 0 : i32
    %c0_i32_0 = arith.constant 0 : i32
    %c0_i32_1 = arith.constant 0 : i32
    return %c0_i32, %c0_i32_0 : i32, i32
  }
  func.func @transform_10(%arg0: i32, %arg1: i32) -> (i32, i32) {
    %c0_i32 = arith.constant 0 : i32
    %c0_i32_0 = arith.constant 0 : i32
    %c0_i32_1 = arith.constant 0 : i32
    return %c0_i32, %c0_i32_0 : i32, i32
  }
  func.func @transform_11(%arg0: i32, %arg1: i32) -> (i32, i32) {
    %c0_i32 = arith.constant 0 : i32
    %c0_i32_0 = arith.constant 0 : i32
    %c0_i32_1 = arith.constant 0 : i32
    return %c0_i32, %c0_i32_0 : i32, i32
  }
  func.func @transform_12(%arg0: i32, %arg1: i32) -> (i32, i32) {
    %c0_i32 = arith.constant 0 : i32
    %c0_i32_0 = arith.constant 0 : i32
    %c0_i32_1 = arith.constant 0 : i32
    return %c0_i32, %c0_i32_0 : i32, i32
  }
  func.func @transform_13(%arg0: i32, %arg1: i32) -> (i32, i32) {
    %c0_i32 = arith.constant 0 : i32
    %c0_i32_0 = arith.constant 0 : i32
    %c0_i32_1 = arith.constant 0 : i32
    return %c0_i32, %c0_i32_0 : i32, i32
  }
  func.func @transform_14(%arg0: i32, %arg1: i32) -> (i32, i32) {
    %c0_i32 = arith.constant 0 : i32
    %c0_i32_0 = arith.constant 0 : i32
    %c0_i32_1 = arith.constant 0 : i32
    return %c0_i32, %c0_i32_0 : i32, i32
  }
  func.func @transform_15(%arg0: i32, %arg1: i32) -> (i32, i32) {
    %c0_i32 = arith.constant 0 : i32
    %c0_i32_0 = arith.constant 0 : i32
    %c0_i32_1 = arith.constant 0 : i32
    return %c0_i32, %c0_i32_0 : i32, i32
  }
  func.func @transform_16(%arg0: i32, %arg1: i32) -> (i32, i32) {
    %c0_i32 = arith.constant 0 : i32
    %c0_i32_0 = arith.constant 0 : i32
    %c0_i32_1 = arith.constant 0 : i32
    return %c0_i32, %c0_i32_0 : i32, i32
  }
  func.func @transform_17(%arg0: i32, %arg1: i32) -> (i32, i32) {
    %c0_i32 = arith.constant 0 : i32
    %c0_i32_0 = arith.constant 0 : i32
    %c0_i32_1 = arith.constant 0 : i32
    return %c0_i32, %c0_i32_0 : i32, i32
  }
  func.func @transform_18(%arg0: i32, %arg1: i32) -> (i32, i32) {
    %c0_i32 = arith.constant 0 : i32
    %c0_i32_0 = arith.constant 0 : i32
    %c0_i32_1 = arith.constant 0 : i32
    return %c0_i32, %c0_i32_0 : i32, i32
  }
  func.func @transform_19(%arg0: i32, %arg1: i32) -> (i32, i32) {
    %c0_i32 = arith.constant 0 : i32
    %c0_i32_0 = arith.constant 0 : i32
    %c0_i32_1 = arith.constant 0 : i32
    return %c0_i32, %c0_i32_0 : i32, i32
  }
  func.func @transform_20(%arg0: i32, %arg1: i32) -> (i32, i32, i32) {
    %c0_i32 = arith.constant 0 : i32
    %c0_i32_0 = arith.constant 0 : i32
    return %arg0, %arg1, %c0_i32 : i32, i32, i32
  }
}

</mosaic_0001>

<llo_original>
// kernel: tpu_custom_call.1
$region0: #{tpu_custom_call.1}
  #allocation0 [shape = 'u32[]', space=smem, size = 0x4, offset = 0x4, fixed_abs, tag = 'smem constant byte address 0x4 - core index']
  #allocation1 [shape = 'u32[144,128]{1,0:T(1,128)}', space=vmem, size = 0x12000, scoped, tag = 'internal scratch']
  #allocation2 [shape = 'bf16[4,16,8]{2,1,0:T(16,128)(2,1)}', space=vmem, size = 0x4000, scoped, tag = 'scratch operand']
  #allocation3 [shape = 'bf16[4,16,8]{2,1,0:T(16,128)(2,1)}', space=vmem, size = 0x4000, scoped, tag = 'scratch operand']
  %s0 = inlined_call_operand.vmem [shape: f32[2,16,32], index: 0, kind: input, shape index: {}]
  %s1 = inlined_call_operand.hbm [shape: f32[2,16,32], index: 1, kind: input, shape index: {}]
  %s2 = inlined_call_operand.vmem [shape: bf16[32,32], index: 2, kind: input, shape index: {}]
  %s3 = inlined_call_operand.vmem [shape: f32[1,32], index: 3, kind: input, shape index: {}]
  %s4 = inlined_call_operand.hbm [shape: bf16[32,32], index: 4, kind: input, shape index: {}]
  %s5 = inlined_call_operand.vmem [shape: f32[1,32], index: 5, kind: input, shape index: {}]
  %s6 = inlined_call_operand.hbm [shape: bf16[32,32], index: 6, kind: input, shape index: {}]
  %s7 = inlined_call_operand.hbm [shape: f32[1,32], index: 7, kind: input, shape index: {}]
  %s8 = inlined_call_operand.hbm [shape: bf16[32,32], index: 8, kind: input, shape index: {}]
  %s9 = inlined_call_operand.hbm [shape: f32[1,32], index: 9, kind: input, shape index: {}]
  %s10 = inlined_call_operand.vmem [shape: f32[1,32], index: 10, kind: input, shape index: {}]
  %s11 = inlined_call_operand.vmem [shape: f32[1,32], index: 11, kind: input, shape index: {}]
  %s12 = inlined_call_operand.vmem [shape: bf16[32,64], index: 12, kind: input, shape index: {}]
  %s13 = inlined_call_operand.vmem [shape: f32[1,64], index: 13, kind: input, shape index: {}]
  %s14 = inlined_call_operand.vmem [shape: bf16[64,32], index: 14, kind: input, shape index: {}]
  %s15 = inlined_call_operand.vmem [shape: f32[1,32], index: 15, kind: input, shape index: {}]
  %s16 = inlined_call_operand.vmem [shape: f32[1,32], index: 16, kind: input, shape index: {}]
  %s17 = inlined_call_operand.vmem [shape: f32[1,32], index: 17, kind: input, shape index: {}]
  %s18 = inlined_call_operand.vmem [shape: f32[1,32], index: 18, kind: input, shape index: {}]
  %s19 = inlined_call_operand.vmem [shape: f32[1,32], index: 19, kind: input, shape index: {}]
  %s20 = inlined_call_operand.hbm [shape: f32[2,16,32], index: 20, kind: output, shape index: {}]
  %s21 = sld [smem:[#allocation0]]
  $region141: #{tpu_custom_call.1} parent=0
    _
  %s23 = ssub.s32 1, %s21
  %s24 = scalar_select 0, %s23, %s21
  $region1: #{tpu_custom_call.1} parent=0
    #allocation4 [shape = 'u8[16384]{0}', space=vmem, size = 0x4000, scoped, tag = 'input window, operand 1']
    #allocation5 [shape = 's32[2]{0}', space=sflag, size = 0x8, scoped, tag = 'scoped memory for tpu_custom_call.1']
    #allocation6 [shape = 's32[2]{0}', space=sflag, size = 0x8, scoped, tag = 'scoped memory for tpu_custom_call.1']
    #allocation7 [shape = 'u8[8192]{0}', space=vmem, size = 0x2000, scoped, tag = 'input window, operand 4, single buffered']
    #allocation8 [shape = 's32[1]{0}', space=sflag, size = 0x4, scoped, tag = 'scoped memory for tpu_custom_call.1']
    #allocation9 [shape = 'u8[8192]{0}', space=vmem, size = 0x2000, scoped, tag = 'input window, operand 6, single buffered']
    #allocation10 [shape = 'u8[512]{0}', space=vmem, size = 0x400, scoped, tag = 'input window, operand 7, single buffered']
    #allocation11 [shape = 's32[1]{0}', space=sflag, size = 0x4, scoped, tag = 'scoped memory for tpu_custom_call.1']
    #allocation12 [shape = 'u8[8192]{0}', space=vmem, size = 0x2000, scoped, tag = 'input window, operand 8, single buffered']
    #allocation13 [shape = 'u8[512]{0}', space=vmem, size = 0x400, scoped, tag = 'input window, operand 9, single buffered']
    #allocation14 [shape = 's32[1]{0}', space=sflag, size = 0x4, scoped, tag = 'scoped memory for tpu_custom_call.1']
    #allocation15 [shape = 'u8[8192]{0}', space=vmem, size = 0x2000, scoped, tag = 'output window, operand 0']
    %25 = vsyncpa [#allocation5], 0
    %s26 = scalar_lea.sflag [#allocation5], 1
    %27 = vsyncpa %s26, 0
    %28 = vsyncpa [#allocation8], 0
    %29 = vsyncpa [#allocation11], 0
    %30 = vsyncpa [#allocation14], 0
    %31 = vsyncpa [#allocation6], 0
    %s32 = scalar_lea.sflag [#allocation6], 1
    %33 = vsyncpa %s32, 0
    loop: start=0, step=1, limit=6
    $region2: #{tpu_custom_call.1} parent=1 // loop_pre_header
      _
    $region3: #{tpu_custom_call.1} parent=1 // loop_header
      %s35 = sphi 0, %s39
      %p36 = scmp.ge.s32.totalorder %s35, 6
      %s42 = sphi 0, %s54
      %s43 = sphi 0, %s50
      %s44 = sphi 0, %s42
      %s45 = sphi 0, %s43
      %s46 = sphi 0, %s44
      %s47 = sphi 0, %s45
      %s57 = sphi 0, %s59
      %s60 = sphi 0, %s57
      %s61 = sphi 0, %s60
      %s77 = sphi 0, %s61
      %s83 = sphi 0, %s85
      %s86 = sphi 0, %s83
      %s87 = sphi 0, %s86
      %s103 = sphi 0, %s87
      %s107 = sphi 0, %s107
      %s109 = sphi 0, %s107
      %s110 = sphi 0, %s109
      %s124 = sphi 0, %s110
      %s128 = sphi 0, %s128
      %s130 = sphi 0, %s128
      %s131 = sphi 0, %s130
      %s145 = sphi 0, %s131
      %s149 = sphi 0, %s149
      %s151 = sphi 0, %s149
      %s152 = sphi 0, %s151
      %s166 = sphi 0, %s152
      %s170 = sphi 0, %s170
      %s172 = sphi 0, %s170
      %s173 = sphi 0, %s172
      %s187 = sphi 0, %s173
      %s191 = sphi 0, %s191
      %s193 = sphi 0, %s191
      %s194 = sphi 0, %s193
      %s208 = sphi 0, %s194
      %s212 = sphi 0, %s212
      %s214 = sphi 0, %s212
      %s215 = sphi 0, %s214
      %s229 = sphi 0, %s215
      %s233 = sphi 0, %s233
      %s235 = sphi 0, %s233
      %s236 = sphi 0, %s235
      %s250 = sphi 0, %s236
      %s254 = sphi 0, %s254
      %s256 = sphi 0, %s254
      %s257 = sphi 0, %s256
      %s271 = sphi 0, %s257
      %s275 = sphi 0, %s275
      %s277 = sphi 0, %s275
      %s278 = sphi 0, %s277
      %s292 = sphi 0, %s278
      %s296 = sphi 0, %s296
      %s298 = sphi 0, %s296
      %s299 = sphi 0, %s298
      %s313 = sphi 0, %s299
      %s317 = sphi 0, %s317
      %s319 = sphi 0, %s317
      %s320 = sphi 0, %s319
      %s334 = sphi 0, %s320
      %s338 = sphi 0, %s338
      %s340 = sphi 0, %s338
      %s341 = sphi 0, %s340
      %s355 = sphi 0, %s341
      %s359 = sphi 0, %s359
      %s361 = sphi 0, %s359
      %s362 = sphi 0, %s361
      %s376 = sphi 0, %s362
      %s380 = sphi 0, %s380
      %s382 = sphi 0, %s380
      %s383 = sphi 0, %s382
      %s397 = sphi 0, %s383
      %s401 = sphi 0, %s401
      %s403 = sphi 0, %s401
      %s404 = sphi 0, %s403
      %s418 = sphi 0, %s404
      %s422 = sphi 0, %s422
      %s424 = sphi 0, %s422
      %s425 = sphi 0, %s424
      %s439 = sphi 0, %s425
      %s443 = sphi 0, %s443
      %s445 = sphi 0, %s443
      %s446 = sphi 0, %s445
      %s460 = sphi 0, %s446
      %s464 = sphi 0, %s464
      %s466 = sphi 0, %s464
      %s467 = sphi 0, %s466
      %s481 = sphi 0, %s467
      %s489 = sphi 0, %s491
      %s492 = sphi 0, %s489
      %s493 = sphi 0, %s492
      %s509 = sphi 0, %s493
    $region4: #{tpu_custom_call.1} parent=1 // loop_header_branch
      %38 = sbr.rel (%p36) target = $region8
    $region5: #{tpu_custom_call.1} parent=1 // loop_body
      %s40 = ssub.s32 %s35, 1
      %s41 = ssub.s32 %s35, 2
      %s48 = sadd.s32 1, %s43
      %p49 = scmp.ge.s32.totalorder %s48, 2
      %s50 = scalar_select %p49, 0, %s48
      %s51 = sadd.s32 1, %s42
      %s52 = scalar_select %p49, %s51, %s42
      %p53 = scmp.ge.s32.totalorder %s52, 2
      %s54 = scalar_select %p53, 0, %s52
      %s55 = ssub.s32 %s42, %s54
      %p56 = scmp.eq.s32.totalorder %s55, 0
      %s58 = sadd.s32 %s57, 1
      %s59 = scalar_select %p56, %s57, %s58
      %p62 = pneg %p56
      %p63 = scmp.eq.s32.totalorder %s35, 3
      %p64 = por %p62, %p63
      %p65 = scmp.ne.s32.totalorder %s57, %s60
      %p66 = scmp.eq.s32.totalorder %s35, 0
      %p67 = por %p65, %p66
      %p68 = scmp.ne.s32.totalorder %s57, %s60
      %p69 = scmp.eq.s32.totalorder %s40, 3
      %p70 = por %p68, %p69
      %p71 = scmp.ne.s32.totalorder %s60, %s61
      %p72 = scmp.eq.s32.totalorder %s40, 0
      %p73 = por %p71, %p72
      %p74 = scmp.ne.s32.totalorder %s60, %s61
      %p75 = scmp.eq.s32.totalorder %s41, 3
      %p76 = por %p74, %p75
      %p78 = scmp.ne.s32.totalorder %s61, %s77
      %p79 = scmp.eq.s32.totalorder %s41, 0
      %p80 = por %p78, %p79
      %s81 = ssub.s32 %s42, %s54
      %p82 = scmp.eq.s32.totalorder %s81, 0
      %s84 = sadd.s32 %s83, 1
      %s85 = scalar_select %p82, %s83, %s84
      %p88 = pneg %p82
      %p89 = scmp.eq.s32.totalorder %s35, 3
      %p90 = por %p88, %p89
      %p91 = scmp.ne.s32.totalorder %s83, %s86
      %p92 = scmp.eq.s32.totalorder %s35, 0
      %p93 = por %p91, %p92
      %p94 = scmp.ne.s32.totalorder %s83, %s86
      %p95 = scmp.eq.s32.totalorder %s40, 3
      %p96 = por %p94, %p95
      %p97 = scmp.ne.s32.totalorder %s86, %s87
      %p98 = scmp.eq.s32.totalorder %s40, 0
      %p99 = por %p97, %p98
      %p100 = scmp.ne.s32.totalorder %s86, %s87
      %p101 = scmp.eq.s32.totalorder %s41, 3
      %p102 = por %p100, %p101
      %p104 = scmp.ne.s32.totalorder %s87, %s103
      %p105 = scmp.eq.s32.totalorder %s41, 0
      %p106 = por %p104, %p105
      %s108 = sadd.s32 %s107, 1
      %p111 = scmp.eq.s32.totalorder %s35, 3
      %p112 = scmp.ne.s32.totalorder %s107, %s109
      %p113 = scmp.eq.s32.totalorder %s35, 0
      %p114 = por %p112, %p113
      %p115 = scmp.ne.s32.totalorder %s107, %s109
      %p116 = scmp.eq.s32.totalorder %s40, 3
      %p117 = por %p115, %p116
      %p118 = scmp.ne.s32.totalorder %s109, %s110
      %p119 = scmp.eq.s32.totalorder %s40, 0
      %p120 = por %p118, %p119
      %p121 = scmp.ne.s32.totalorder %s109, %s110
      %p122 = scmp.eq.s32.totalorder %s41, 3
      %p123 = por %p121, %p122
      %p125 = scmp.ne.s32.totalorder %s110, %s124
      %p126 = scmp.eq.s32.totalorder %s41, 0
      %p127 = por %p125, %p126
      %s129 = sadd.s32 %s128, 1
      %p132 = scmp.eq.s32.totalorder %s35, 3
      %p133 = scmp.ne.s32.totalorder %s128, %s130
      %p134 = scmp.eq.s32.totalorder %s35, 0
      %p135 = por %p133, %p134
      %p136 = scmp.ne.s32.totalorder %s128, %s130
      %p137 = scmp.eq.s32.totalorder %s40, 3
      %p138 = por %p136, %p137
      %p139 = scmp.ne.s32.totalorder %s130, %s131
      %p140 = scmp.eq.s32.totalorder %s40, 0
      %p141 = por %p139, %p140
      %p142 = scmp.ne.s32.totalorder %s130, %s131
      %p143 = scmp.eq.s32.totalorder %s41, 3
      %p144 = por %p142, %p143
      %p146 = scmp.ne.s32.totalorder %s131, %s145
      %p147 = scmp.eq.s32.totalorder %s41, 0
      %p148 = por %p146, %p147
      %s150 = sadd.s32 %s149, 1
      %p153 = scmp.eq.s32.totalorder %s35, 3
      %p154 = scmp.ne.s32.totalorder %s149, %s151
      %p155 = scmp.eq.s32.totalorder %s35, 0
      %p156 = por %p154, %p155
      %p157 = scmp.ne.s32.totalorder %s149, %s151
      %p158 = scmp.eq.s32.totalorder %s40, 3
      %p159 = por %p157, %p158
      %p160 = scmp.ne.s32.totalorder %s151, %s152
      %p161 = scmp.eq.s32.totalorder %s40, 0
      %p162 = por %p160, %p161
      %p163 = scmp.ne.s32.totalorder %s151, %s152
      %p164 = scmp.eq.s32.totalorder %s41, 3
      %p165 = por %p163, %p164
      %p167 = scmp.ne.s32.totalorder %s152, %s166
      %p168 = scmp.eq.s32.totalorder %s41, 0
      %p169 = por %p167, %p168
      %s171 = sadd.s32 %s170, 1
      %p174 = scmp.eq.s32.totalorder %s35, 3
      %p175 = scmp.ne.s32.totalorder %s170, %s172
      %p176 = scmp.eq.s32.totalorder %s35, 0
      %p177 = por %p175, %p176
      %p178 = scmp.ne.s32.totalorder %s170, %s172
      %p179 = scmp.eq.s32.totalorder %s40, 3
      %p180 = por %p178, %p179
      %p181 = scmp.ne.s32.totalorder %s172, %s173
      %p182 = scmp.eq.s32.totalorder %s40, 0
      %p183 = por %p181, %p182
      %p184 = scmp.ne.s32.totalorder %s172, %s173
      %p185 = scmp.eq.s32.totalorder %s41, 3
      %p186 = por %p184, %p185
      %p188 = scmp.ne.s32.totalorder %s173, %s187
      %p189 = scmp.eq.s32.totalorder %s41, 0
      %p190 = por %p188, %p189
      %s192 = sadd.s32 %s191, 1
      %p195 = scmp.eq.s32.totalorder %s35, 3
      %p196 = scmp.ne.s32.totalorder %s191, %s193
      %p197 = scmp.eq.s32.totalorder %s35, 0
      %p198 = por %p196, %p197
      %p199 = scmp.ne.s32.totalorder %s191, %s193
      %p200 = scmp.eq.s32.totalorder %s40, 3
      %p201 = por %p199, %p200
      %p202 = scmp.ne.s32.totalorder %s193, %s194
      %p203 = scmp.eq.s32.totalorder %s40, 0
      %p204 = por %p202, %p203
      %p205 = scmp.ne.s32.totalorder %s193, %s194
      %p206 = scmp.eq.s32.totalorder %s41, 3
      %p207 = por %p205, %p206
      %p209 = scmp.ne.s32.totalorder %s194, %s208
      %p210 = scmp.eq.s32.totalorder %s41, 0
      %p211 = por %p209, %p210
      %s213 = sadd.s32 %s212, 1
      %p216 = scmp.eq.s32.totalorder %s35, 3
      %p217 = scmp.ne.s32.totalorder %s212, %s214
      %p218 = scmp.eq.s32.totalorder %s35, 0
      %p219 = por %p217, %p218
      %p220 = scmp.ne.s32.totalorder %s212, %s214
      %p221 = scmp.eq.s32.totalorder %s40, 3
      %p222 = por %p220, %p221
      %p223 = scmp.ne.s32.totalorder %s214, %s215
      %p224 = scmp.eq.s32.totalorder %s40, 0
      %p225 = por %p223, %p224
      %p226 = scmp.ne.s32.totalorder %s214, %s215
      %p227 = scmp.eq.s32.totalorder %s41, 3
      %p228 = por %p226, %p227
      %p230 = scmp.ne.s32.totalorder %s215, %s229
      %p231 = scmp.eq.s32.totalorder %s41, 0
      %p232 = por %p230, %p231
      %s234 = sadd.s32 %s233, 1
      %p237 = scmp.eq.s32.totalorder %s35, 3
      %p238 = scmp.ne.s32.totalorder %s233, %s235
      %p239 = scmp.eq.s32.totalorder %s35, 0
      %p240 = por %p238, %p239
      %p241 = scmp.ne.s32.totalorder %s233, %s235
      %p242 = scmp.eq.s32.totalorder %s40, 3
      %p243 = por %p241, %p242
      %p244 = scmp.ne.s32.totalorder %s235, %s236
      %p245 = scmp.eq.s32.totalorder %s40, 0
      %p246 = por %p244, %p245
      %p247 = scmp.ne.s32.totalorder %s235, %s236
      %p248 = scmp.eq.s32.totalorder %s41, 3
      %p249 = por %p247, %p248
      %p251 = scmp.ne.s32.totalorder %s236, %s250
      %p252 = scmp.eq.s32.totalorder %s41, 0
      %p253 = por %p251, %p252
      %s255 = sadd.s32 %s254, 1
      %p258 = scmp.eq.s32.totalorder %s35, 3
      %p259 = scmp.ne.s32.totalorder %s254, %s256
      %p260 = scmp.eq.s32.totalorder %s35, 0
      %p261 = por %p259, %p260
      %p262 = scmp.ne.s32.totalorder %s254, %s256
      %p263 = scmp.eq.s32.totalorder %s40, 3
      %p264 = por %p262, %p263
      %p265 = scmp.ne.s32.totalorder %s256, %s257
      %p266 = scmp.eq.s32.totalorder %s40, 0
      %p267 = por %p265, %p266
      %p268 = scmp.ne.s32.totalorder %s256, %s257
      %p269 = scmp.eq.s32.totalorder %s41, 3
      %p270 = por %p268, %p269
      %p272 = scmp.ne.s32.totalorder %s257, %s271
      %p273 = scmp.eq.s32.totalorder %s41, 0
      %p274 = por %p272, %p273
      %s276 = sadd.s32 %s275, 1
      %p279 = scmp.eq.s32.totalorder %s35, 3
      %p280 = scmp.ne.s32.totalorder %s275, %s277
      %p281 = scmp.eq.s32.totalorder %s35, 0
      %p282 = por %p280, %p281
      %p283 = scmp.ne.s32.totalorder %s275, %s277
      %p284 = scmp.eq.s32.totalorder %s40, 3
      %p285 = por %p283, %p284
      %p286 = scmp.ne.s32.totalorder %s277, %s278
      %p287 = scmp.eq.s32.totalorder %s40, 0
      %p288 = por %p286, %p287
      %p289 = scmp.ne.s32.totalorder %s277, %s278
      %p290 = scmp.eq.s32.totalorder %s41, 3
      %p291 = por %p289, %p290
      %p293 = scmp.ne.s32.totalorder %s278, %s292
      %p294 = scmp.eq.s32.totalorder %s41, 0
      %p295 = por %p293, %p294
      %s297 = sadd.s32 %s296, 1
      %p300 = scmp.eq.s32.totalorder %s35, 3
      %p301 = scmp.ne.s32.totalorder %s296, %s298
      %p302 = scmp.eq.s32.totalorder %s35, 0
      %p303 = por %p301, %p302
      %p304 = scmp.ne.s32.totalorder %s296, %s298
      %p305 = scmp.eq.s32.totalorder %s40, 3
      %p306 = por %p304, %p305
      %p307 = scmp.ne.s32.totalorder %s298, %s299
      %p308 = scmp.eq.s32.totalorder %s40, 0
      %p309 = por %p307, %p308
      %p310 = scmp.ne.s32.totalorder %s298, %s299
      %p311 = scmp.eq.s32.totalorder %s41, 3
      %p312 = por %p310, %p311
      %p314 = scmp.ne.s32.totalorder %s299, %s313
      %p315 = scmp.eq.s32.totalorder %s41, 0
      %p316 = por %p314, %p315
      %s318 = sadd.s32 %s317, 1
      %p321 = scmp.eq.s32.totalorder %s35, 3
      %p322 = scmp.ne.s32.totalorder %s317, %s319
      %p323 = scmp.eq.s32.totalorder %s35, 0
      %p324 = por %p322, %p323
      %p325 = scmp.ne.s32.totalorder %s317, %s319
      %p326 = scmp.eq.s32.totalorder %s40, 3
      %p327 = por %p325, %p326
      %p328 = scmp.ne.s32.totalorder %s319, %s320
      %p329 = scmp.eq.s32.totalorder %s40, 0
      %p330 = por %p328, %p329
      %p331 = scmp.ne.s32.totalorder %s319, %s320
      %p332 = scmp.eq.s32.totalorder %s41, 3
      %p333 = por %p331, %p332
      %p335 = scmp.ne.s32.totalorder %s320, %s334
      %p336 = scmp.eq.s32.totalorder %s41, 0
      %p337 = por %p335, %p336
      %s339 = sadd.s32 %s338, 1
      %p342 = scmp.eq.s32.totalorder %s35, 3
      %p343 = scmp.ne.s32.totalorder %s338, %s340
      %p344 = scmp.eq.s32.totalorder %s35, 0
      %p345 = por %p343, %p344
      %p346 = scmp.ne.s32.totalorder %s338, %s340
      %p347 = scmp.eq.s32.totalorder %s40, 3
      %p348 = por %p346, %p347
      %p349 = scmp.ne.s32.totalorder %s340, %s341
      %p350 = scmp.eq.s32.totalorder %s40, 0
      %p351 = por %p349, %p350
      %p352 = scmp.ne.s32.totalorder %s340, %s341
      %p353 = scmp.eq.s32.totalorder %s41, 3
      %p354 = por %p352, %p353
      %p356 = scmp.ne.s32.totalorder %s341, %s355
      %p357 = scmp.eq.s32.totalorder %s41, 0
      %p358 = por %p356, %p357
      %s360 = sadd.s32 %s359, 1
      %p363 = scmp.eq.s32.totalorder %s35, 3
      %p364 = scmp.ne.s32.totalorder %s359, %s361
      %p365 = scmp.eq.s32.totalorder %s35, 0
      %p366 = por %p364, %p365
      %p367 = scmp.ne.s32.totalorder %s359, %s361
      %p368 = scmp.eq.s32.totalorder %s40, 3
      %p369 = por %p367, %p368
      %p370 = scmp.ne.s32.totalorder %s361, %s362
      %p371 = scmp.eq.s32.totalorder %s40, 0
      %p372 = por %p370, %p371
      %p373 = scmp.ne.s32.totalorder %s361, %s362
      %p374 = scmp.eq.s32.totalorder %s41, 3
      %p375 = por %p373, %p374
      %p377 = scmp.ne.s32.totalorder %s362, %s376
      %p378 = scmp.eq.s32.totalorder %s41, 0
      %p379 = por %p377, %p378
      %s381 = sadd.s32 %s380, 1
      %p384 = scmp.eq.s32.totalorder %s35, 3
      %p385 = scmp.ne.s32.totalorder %s380, %s382
      %p386 = scmp.eq.s32.totalorder %s35, 0
      %p387 = por %p385, %p386
      %p388 = scmp.ne.s32.totalorder %s380, %s382
      %p389 = scmp.eq.s32.totalorder %s40, 3
      %p390 = por %p388, %p389
      %p391 = scmp.ne.s32.totalorder %s382, %s383
      %p392 = scmp.eq.s32.totalorder %s40, 0
      %p393 = por %p391, %p392
      %p394 = scmp.ne.s32.totalorder %s382, %s383
      %p395 = scmp.eq.s32.totalorder %s41, 3
      %p396 = por %p394, %p395
      %p398 = scmp.ne.s32.totalorder %s383, %s397
      %p399 = scmp.eq.s32.totalorder %s41, 0
      %p400 = por %p398, %p399
      %s402 = sadd.s32 %s401, 1
      %p405 = scmp.eq.s32.totalorder %s35, 3
      %p406 = scmp.ne.s32.totalorder %s401, %s403
      %p407 = scmp.eq.s32.totalorder %s35, 0
      %p408 = por %p406, %p407
      %p409 = scmp.ne.s32.totalorder %s401, %s403
      %p410 = scmp.eq.s32.totalorder %s40, 3
      %p411 = por %p409, %p410
      %p412 = scmp.ne.s32.totalorder %s403, %s404
      %p413 = scmp.eq.s32.totalorder %s40, 0
      %p414 = por %p412, %p413
      %p415 = scmp.ne.s32.totalorder %s403, %s404
      %p416 = scmp.eq.s32.totalorder %s41, 3
      %p417 = por %p415, %p416
      %p419 = scmp.ne.s32.totalorder %s404, %s418
      %p420 = scmp.eq.s32.totalorder %s41, 0
      %p421 = por %p419, %p420
      %s423 = sadd.s32 %s422, 1
      %p426 = scmp.eq.s32.totalorder %s35, 3
      %p427 = scmp.ne.s32.totalorder %s422, %s424
      %p428 = scmp.eq.s32.totalorder %s35, 0
      %p429 = por %p427, %p428
      %p430 = scmp.ne.s32.totalorder %s422, %s424
      %p431 = scmp.eq.s32.totalorder %s40, 3
      %p432 = por %p430, %p431
      %p433 = scmp.ne.s32.totalorder %s424, %s425
      %p434 = scmp.eq.s32.totalorder %s40, 0
      %p435 = por %p433, %p434
      %p436 = scmp.ne.s32.totalorder %s424, %s425
      %p437 = scmp.eq.s32.totalorder %s41, 3
      %p438 = por %p436, %p437
      %p440 = scmp.ne.s32.totalorder %s425, %s439
      %p441 = scmp.eq.s32.totalorder %s41, 0
      %p442 = por %p440, %p441
      %s444 = sadd.s32 %s443, 1
      %p447 = scmp.eq.s32.totalorder %s35, 3
      %p448 = scmp.ne.s32.totalorder %s443, %s445
      %p449 = scmp.eq.s32.totalorder %s35, 0
      %p450 = por %p448, %p449
      %p451 = scmp.ne.s32.totalorder %s443, %s445
      %p452 = scmp.eq.s32.totalorder %s40, 3
      %p453 = por %p451, %p452
      %p454 = scmp.ne.s32.totalorder %s445, %s446
      %p455 = scmp.eq.s32.totalorder %s40, 0
      %p456 = por %p454, %p455
      %p457 = scmp.ne.s32.totalorder %s445, %s446
      %p458 = scmp.eq.s32.totalorder %s41, 3
      %p459 = por %p457, %p458
      %p461 = scmp.ne.s32.totalorder %s446, %s460
      %p462 = scmp.eq.s32.totalorder %s41, 0
      %p463 = por %p461, %p462
      %s465 = sadd.s32 %s464, 1
      %p468 = scmp.eq.s32.totalorder %s35, 3
      %p469 = scmp.ne.s32.totalorder %s464, %s466
      %p470 = scmp.eq.s32.totalorder %s35, 0
      %p471 = por %p469, %p470
      %p472 = scmp.ne.s32.totalorder %s464, %s466
      %p473 = scmp.eq.s32.totalorder %s40, 3
      %p474 = por %p472, %p473
      %p475 = scmp.ne.s32.totalorder %s466, %s467
      %p476 = scmp.eq.s32.totalorder %s40, 0
      %p477 = por %p475, %p476
      %p478 = scmp.ne.s32.totalorder %s466, %s467
      %p479 = scmp.eq.s32.totalorder %s41, 3
      %p480 = por %p478, %p479
      %p482 = scmp.ne.s32.totalorder %s467, %s481
      %p483 = scmp.eq.s32.totalorder %s41, 0
      %p484 = por %p482, %p483
      %s485 = ssub.s32 %s42, %s54
      %s486 = ssub.s32 %s43, %s50
      %s487 = sor.u32 %s485, %s486
      %p488 = scmp.eq.s32.totalorder %s487, 0
      %s490 = sadd.s32 %s489, 1
      %s491 = scalar_select %p488, %s489, %s490
      %p494 = pneg %p488
      %p495 = scmp.eq.s32.totalorder %s35, 3
      %p496 = por %p494, %p495
      %p497 = scmp.ne.s32.totalorder %s489, %s492
      %p498 = scmp.eq.s32.totalorder %s35, 0
      %p499 = por %p497, %p498
      %p500 = scmp.ne.s32.totalorder %s489, %s492
      %p501 = scmp.eq.s32.totalorder %s40, 3
      %p502 = por %p500, %p501
      %p503 = scmp.ne.s32.totalorder %s492, %s493
      %p504 = scmp.eq.s32.totalorder %s40, 0
      %p505 = por %p503, %p504
      %p506 = scmp.ne.s32.totalorder %s492, %s493
      %p507 = scmp.eq.s32.totalorder %s41, 3
      %p508 = por %p506, %p507
      %p510 = scmp.ne.s32.totalorder %s493, %s509
      %p511 = scmp.eq.s32.totalorder %s41, 0
      %p512 = por %p510, %p511
      %p513 = scmp.le.s32.totalorder 1, %s35
      %p514 = scmp.lt.s32.totalorder %s35, 5
      %p515 = pnand %p513, %p514
      %p516 = pneg %p515
      // Predicated region
      $region9: #{tpu_custom_call.1} parent=5 // pred_check
        _
      $region10: #{tpu_custom_call.1} parent=5 // pred_check_branch
        %518 = sbr.rel (%p515) target = $region12
      $region11: #{tpu_custom_call.1} parent=5 // pred_region
        %s519 = ssub.s32 %s35, 1
        // Predicated region
        $region13: #{tpu_custom_call.1} parent=11 // pred_check
          %p520 = pneg %p120
        $region14: #{tpu_custom_call.1} parent=11 // pred_check_branch
          %522 = sbr.rel (%p520) target = $region16
        $region15: #{tpu_custom_call.1} parent=11 // pred_region
          _
        $region16: #{tpu_custom_call.1} parent=11 // pred_fallthru
          _
        // Predicated region
        $region17: #{tpu_custom_call.1} parent=11 // pred_check
          %p523 = pneg %p141
        $region18: #{tpu_custom_call.1} parent=11 // pred_check_branch
          %525 = sbr.rel (%p523) target = $region20
        $region19: #{tpu_custom_call.1} parent=11 // pred_region
          _
        $region20: #{tpu_custom_call.1} parent=11 // pred_fallthru
          _
        // Predicated region
        $region21: #{tpu_custom_call.1} parent=11 // pred_check
          %p526 = pneg %p162
        $region22: #{tpu_custom_call.1} parent=11 // pred_check_branch
          %528 = sbr.rel (%p526) target = $region24
        $region23: #{tpu_custom_call.1} parent=11 // pred_region
          %s530 = ssub.s32 256, 256
          %531 = vsyncadd [#allocation8], %s530
          %s532 = sshll.u32 [#allocation7], 4
          %s533 = int_to_ptr.vmem [resolvable:$true] %s532
          %538 = dma.hbm_to_vmem [thread:$0]  %s4, 256, %s533, [#allocation8], 64, 64, 4
        $region24: #{tpu_custom_call.1} parent=11 // pred_fallthru
          _
        // Predicated region
        $region25: #{tpu_custom_call.1} parent=11 // pred_check
          %p539 = pneg %p183
        $region26: #{tpu_custom_call.1} parent=11 // pred_check_branch
          %541 = sbr.rel (%p539) target = $region28
        $region27: #{tpu_custom_call.1} parent=11 // pred_region
          _
        $region28: #{tpu_custom_call.1} parent=11 // pred_fallthru
          _
        // Predicated region
        $region29: #{tpu_custom_call.1} parent=11 // pred_check
          %p542 = pneg %p204
        $region30: #{tpu_custom_call.1} parent=11 // pred_check_branch
          %544 = sbr.rel (%p542) target = $region32
        $region31: #{tpu_custom_call.1} parent=11 // pred_region
          %s546 = ssub.s32 256, 256
          %547 = vsyncadd [#allocation8], %s546
          %s548 = sshll.u32 [#allocation9], 4
          %s549 = int_to_ptr.vmem [resolvable:$true] %s548
          %554 = dma.hbm_to_vmem [thread:$0]  %s6, 256, %s549, [#allocation8], 64, 64, 4
        $region32: #{tpu_custom_call.1} parent=11 // pred_fallthru
          _
        // Predicated region
        $region33: #{tpu_custom_call.1} parent=11 // pred_check
          %p555 = pneg %p225
        $region34: #{tpu_custom_call.1} parent=11 // pred_check_branch
          %557 = sbr.rel (%p555) target = $region36
        $region35: #{tpu_custom_call.1} parent=11 // pred_region
          %s559 = ssub.s32 16, 16
          %560 = vsyncadd [#allocation11], %s559
          %s562 = sshll.u32 [#allocation10], 4
          %s563 = int_to_ptr.vmem [resolvable:$true] %s562
          %565 = dma.hbm_to_vmem [thread:$0]  %s7, 16, %s563, [#allocation11]
        $region36: #{tpu_custom_call.1} parent=11 // pred_fallthru
          _
        // Predicated region
        $region37: #{tpu_custom_call.1} parent=11 // pred_check
          %p566 = pneg %p246
        $region38: #{tpu_custom_call.1} parent=11 // pred_check_branch
          %568 = sbr.rel (%p566) target = $region40
        $region39: #{tpu_custom_call.1} parent=11 // pred_region
          %s570 = ssub.s32 256, 256
          %571 = vsyncadd [#allocation11], %s570
          %s572 = sshll.u32 [#allocation12], 4
          %s573 = int_to_ptr.vmem [resolvable:$true] %s572
          %578 = dma.hbm_to_vmem [thread:$0]  %s8, 256, %s573, [#allocation11], 64, 64, 4
        $region40: #{tpu_custom_call.1} parent=11 // pred_fallthru
          _
        // Predicated region
        $region41: #{tpu_custom_call.1} parent=11 // pred_check
          %p579 = pneg %p267
        $region42: #{tpu_custom_call.1} parent=11 // pred_check_branch
          %581 = sbr.rel (%p579) target = $region44
        $region43: #{tpu_custom_call.1} parent=11 // pred_region
          %s583 = ssub.s32 16, 16
          %584 = vsyncadd [#allocation14], %s583
          %s586 = sshll.u32 [#allocation13], 4
          %s587 = int_to_ptr.vmem [resolvable:$true] %s586
          %589 = dma.hbm_to_vmem [thread:$0]  %s9, 16, %s587, [#allocation14]
        $region44: #{tpu_custom_call.1} parent=11 // pred_fallthru
          _
        // Predicated region
        $region45: #{tpu_custom_call.1} parent=11 // pred_check
          %p590 = pneg %p288
        $region46: #{tpu_custom_call.1} parent=11 // pred_check_branch
          %592 = sbr.rel (%p590) target = $region48
        $region47: #{tpu_custom_call.1} parent=11 // pred_region
          _
        $region48: #{tpu_custom_call.1} parent=11 // pred_fallthru
          _
        // Predicated region
        $region49: #{tpu_custom_call.1} parent=11 // pred_check
          %p593 = pneg %p309
        $region50: #{tpu_custom_call.1} parent=11 // pred_check_branch
          %595 = sbr.rel (%p593) target = $region52
        $region51: #{tpu_custom_call.1} parent=11 // pred_region
          _
        $region52: #{tpu_custom_call.1} parent=11 // pred_fallthru
          _
        // Predicated region
        $region53: #{tpu_custom_call.1} parent=11 // pred_check
          %p596 = pneg %p330
        $region54: #{tpu_custom_call.1} parent=11 // pred_check_branch
          %598 = sbr.rel (%p596) target = $region56
        $region55: #{tpu_custom_call.1} parent=11 // pred_region
          _
        $region56: #{tpu_custom_call.1} parent=11 // pred_fallthru
          _
        // Predicated region
        $region57: #{tpu_custom_call.1} parent=11 // pred_check
          %p599 = pneg %p351
        $region58: #{tpu_custom_call.1} parent=11 // pred_check_branch
          %601 = sbr.rel (%p599) target = $region60
        $region59: #{tpu_custom_call.1} parent=11 // pred_region
          _
        $region60: #{tpu_custom_call.1} parent=11 // pred_fallthru
          _
        // Predicated region
        $region61: #{tpu_custom_call.1} parent=11 // pred_check
          %p602 = pneg %p372
        $region62: #{tpu_custom_call.1} parent=11 // pred_check_branch
          %604 = sbr.rel (%p602) target = $region64
        $region63: #{tpu_custom_call.1} parent=11 // pred_region
          _
        $region64: #{tpu_custom_call.1} parent=11 // pred_fallthru
          _
        // Predicated region
        $region65: #{tpu_custom_call.1} parent=11 // pred_check
          %p605 = pneg %p393
        $region66: #{tpu_custom_call.1} parent=11 // pred_check_branch
          %607 = sbr.rel (%p605) target = $region68
        $region67: #{tpu_custom_call.1} parent=11 // pred_region
          _
        $region68: #{tpu_custom_call.1} parent=11 // pred_fallthru
          _
        // Predicated region
        $region69: #{tpu_custom_call.1} parent=11 // pred_check
          %p608 = pneg %p414
        $region70: #{tpu_custom_call.1} parent=11 // pred_check_branch
          %610 = sbr.rel (%p608) target = $region72
        $region71: #{tpu_custom_call.1} parent=11 // pred_region
          _
        $region72: #{tpu_custom_call.1} parent=11 // pred_fallthru
          _
        // Predicated region
        $region73: #{tpu_custom_call.1} parent=11 // pred_check
          %p611 = pneg %p435
        $region74: #{tpu_custom_call.1} parent=11 // pred_check_branch
          %613 = sbr.rel (%p611) target = $region76
        $region75: #{tpu_custom_call.1} parent=11 // pred_region
          _
        $region76: #{tpu_custom_call.1} parent=11 // pred_fallthru
          _
        // Predicated region
        $region77: #{tpu_custom_call.1} parent=11 // pred_check
          %p614 = pneg %p456
        $region78: #{tpu_custom_call.1} parent=11 // pred_check_branch
          %616 = sbr.rel (%p614) target = $region80
        $region79: #{tpu_custom_call.1} parent=11 // pred_region
          _
        $region80: #{tpu_custom_call.1} parent=11 // pred_fallthru
          _
        // Predicated region
        $region81: #{tpu_custom_call.1} parent=11 // pred_check
          %p617 = pneg %p477
        $region82: #{tpu_custom_call.1} parent=11 // pred_check_branch
          %619 = sbr.rel (%p617) target = $region84
        $region83: #{tpu_custom_call.1} parent=11 // pred_region
          _
        $region84: #{tpu_custom_call.1} parent=11 // pred_fallthru
          _
      $region12: #{tpu_custom_call.1} parent=5 // pred_fallthru
        _
      %p620 = scmp.lt.s32.totalorder %s35, 4
      // Predicated region
      $region85: #{tpu_custom_call.1} parent=5 // pred_check
        %p621 = pneg %p620
      $region86: #{tpu_custom_call.1} parent=5 // pred_check_branch
        %623 = sbr.rel (%p621) target = $region88
      $region87: #{tpu_custom_call.1} parent=5 // pred_region
        // Predicated region
        $region89: #{tpu_custom_call.1} parent=87 // pred_check
          %p624 = pneg %p67
        $region90: #{tpu_custom_call.1} parent=87 // pred_check_branch
          %626 = sbr.rel (%p624) target = $region92
        $region91: #{tpu_custom_call.1} parent=87 // pred_region
          %p627 = scmp.lt.s32.totalorder %s42, 1
          %s628 = scalar_select %p627, %s42, 1
          %s629 = smul.addr %s628, 2
          %s630 = smul.addr %s629, 8
          %s631 = scalar_lea.vmem %s0, %s630
        $region92: #{tpu_custom_call.1} parent=87 // pred_fallthru
          _
        // Predicated region
        $region93: #{tpu_custom_call.1} parent=87 // pred_check
          %p632 = pneg %p93
        $region94: #{tpu_custom_call.1} parent=87 // pred_check_branch
          %634 = sbr.rel (%p632) target = $region96
        $region95: #{tpu_custom_call.1} parent=87 // pred_region
          %s635 = sand.u32 %s83, 1
          %s636 = scalar_lea.sflag [#allocation5], %s635
          %s637 = sand.u32 %s83, 1
          %s638 = smul.addr %s637, 16
          %s639 = scalar_lea.vmem [#allocation4], %s638
          %s641 = ssub.s32 256, 256
          %642 = vsyncadd %s636, %s641
          %s643 = smul.addr %s42, 2
          %s644 = smul.addr %s643, 128
          %s645 = scalar_lea.hbm %s1, %s644
          %s646 = sshll.u32 %s639, 4
          %s647 = int_to_ptr.vmem [resolvable:$true] %s646
          %652 = dma.hbm_to_vmem [thread:$0]  %s645, 256, %s647, %s636, 128, 128, 8
        $region96: #{tpu_custom_call.1} parent=87 // pred_fallthru
          _
      $region88: #{tpu_custom_call.1} parent=5 // pred_fallthru
        _
      %p653 = scmp.le.s32.totalorder 1, %s35
      %p654 = scmp.lt.s32.totalorder %s35, 5
      %p655 = pnand %p653, %p654
      %p656 = pneg %p655
      // Predicated region
      $region97: #{tpu_custom_call.1} parent=5 // pred_check
        _
      $region98: #{tpu_custom_call.1} parent=5 // pred_check_branch
        %658 = sbr.rel (%p655) target = $region100
      $region99: #{tpu_custom_call.1} parent=5 // pred_region
        %s659 = ssub.s32 %s35, 1
        %s660 = sand.u32 %s86, 1
        %s661 = scalar_lea.sflag [#allocation5], %s660
        %s662 = sand.u32 %s86, 1
        %s663 = smul.addr %s662, 16
        %s664 = scalar_lea.vmem [#allocation4], %s663
        // Predicated region
        $region101: #{tpu_custom_call.1} parent=99 // pred_check
          %p665 = pneg %p99
        $region102: #{tpu_custom_call.1} parent=99 // pred_check_branch
          %667 = sbr.rel (%p665) target = $region104
        $region103: #{tpu_custom_call.1} parent=99 // pred_region
          %668 = dma.done %s661, 256
        $region104: #{tpu_custom_call.1} parent=99 // pred_fallthru
          _
        // Predicated region
        $region105: #{tpu_custom_call.1} parent=99 // pred_check
          %p669 = pneg %p162
        $region106: #{tpu_custom_call.1} parent=99 // pred_check_branch
          %671 = sbr.rel (%p669) target = $region108
        $region107: #{tpu_custom_call.1} parent=99 // pred_region
          %672 = dma.done [#allocation8], 256
        $region108: #{tpu_custom_call.1} parent=99 // pred_fallthru
          _
        // Predicated region
        $region109: #{tpu_custom_call.1} parent=99 // pred_check
          %p673 = pneg %p204
        $region110: #{tpu_custom_call.1} parent=99 // pred_check_branch
          %675 = sbr.rel (%p673) target = $region112
        $region111: #{tpu_custom_call.1} parent=99 // pred_region
          %676 = dma.done [#allocation8], 256
        $region112: #{tpu_custom_call.1} parent=99 // pred_fallthru
          _
        // Predicated region
        $region113: #{tpu_custom_call.1} parent=99 // pred_check
          %p677 = pneg %p225
        $region114: #{tpu_custom_call.1} parent=99 // pred_check_branch
          %679 = sbr.rel (%p677) target = $region116
        $region115: #{tpu_custom_call.1} parent=99 // pred_region
          %680 = dma.done [#allocation11], 16
        $region116: #{tpu_custom_call.1} parent=99 // pred_fallthru
          _
        // Predicated region
        $region117: #{tpu_custom_call.1} parent=99 // pred_check
          %p681 = pneg %p246
        $region118: #{tpu_custom_call.1} parent=99 // pred_check_branch
          %683 = sbr.rel (%p681) target = $region120
        $region119: #{tpu_custom_call.1} parent=99 // pred_region
          %684 = dma.done [#allocation11], 256
        $region120: #{tpu_custom_call.1} parent=99 // pred_fallthru
          _
        // Predicated region
        $region121: #{tpu_custom_call.1} parent=99 // pred_check
          %p685 = pneg %p267
        $region122: #{tpu_custom_call.1} parent=99 // pred_check_branch
          %687 = sbr.rel (%p685) target = $region124
        $region123: #{tpu_custom_call.1} parent=99 // pred_region
          %688 = dma.done [#allocation14], 16
        $region124: #{tpu_custom_call.1} parent=99 // pred_fallthru
          _
        %p689 = scmp.lt.s32.totalorder %s44, 1
        %s690 = scalar_select %p689, %s44, 1
        %s691 = smul.addr %s690, 2
        %s692 = smul.addr %s691, 8
        %s693 = scalar_lea.vmem %s0, %s692
        %p694 = pneg %p73
        %p695 = pneg %p70
        %s696 = sand.u32 %s86, 1
        %s697 = scalar_lea.sflag [#allocation5], %s696
        %s698 = sand.u32 %s86, 1
        %s699 = smul.addr %s698, 16
        %s700 = scalar_lea.vmem [#allocation4], %s699
        %p701 = pneg %p99
        %p702 = pneg %p96
        %p703 = pneg %p120
        %p704 = pneg %p117
        %p705 = pneg %p141
        %p706 = pneg %p138
        %p707 = pneg %p162
        %p708 = pneg %p159
        %p709 = pneg %p183
        %p710 = pneg %p180
        %p711 = pneg %p204
        %p712 = pneg %p201
        %p713 = pneg %p225
        %p714 = pneg %p222
        %p715 = pneg %p246
        %p716 = pneg %p243
        %p717 = pneg %p267
        %p718 = pneg %p264
        %p719 = pneg %p288
        %p720 = pneg %p285
        %p721 = pneg %p309
        %p722 = pneg %p306
        %p723 = pneg %p330
        %p724 = pneg %p327
        %p725 = pneg %p351
        %p726 = pneg %p348
        %p727 = pneg %p372
        %p728 = pneg %p369
        %p729 = pneg %p393
        %p730 = pneg %p390
        %p731 = pneg %p414
        %p732 = pneg %p411
        %p733 = pneg %p435
        %p734 = pneg %p432
        %p735 = pneg %p456
        %p736 = pneg %p453
        %p737 = pneg %p477
        %p738 = pneg %p474
        %p739 = pneg %p505
        %p740 = pneg %p502
        %s741 = sand.u32 %s492, 1
        %s742 = scalar_lea.sflag [#allocation6], %s741
        %s743 = sand.u32 %s492, 1
        %s744 = smul.addr %s743, 8
        %s745 = scalar_lea.vmem [#allocation15], %s744
        %p746 = scmp.lt.s32.totalorder %s44, 1
        %s747 = scalar_select %p746, %s44, 1
        %s748 = smul.addr %s747, 2
        %s749 = smul.addr %s748, 8
        %s750 = scalar_lea.vmem %s0, %s749
        %p752 = scmp.eq.s32.totalorder %s45, 0
        // Predicated region
        $region125: #{tpu_custom_call.1} parent=99 // pred_check
          %p753 = pneg %p752
        $region126: #{tpu_custom_call.1} parent=99 // pred_check_branch
          %755 = sbr.rel (%p753) target = $region128
        $region127: #{tpu_custom_call.1} parent=99 // pred_region
          %v756 = vld [vmem:[%s750] sm:$0xff]
          %v757 = vld [vmem:[%s750 + $0x8] sm:$0xff]
          %v758 = vld [vmem:[%s664] sm:$0xff]
          %v759 = vld [vmem:[%s664 + $0x8] sm:$0xff]
          %v760 = vadd.f32 %v756, %v758
          %v761 = vadd.f32 %v757, %v759
          %v762 = vpack.c.bf16 %v761, %v760
          %v763 = vld [vmem:[#allocation7] sm:$0xf]
          %v764 = vld [vmem:[#allocation7 + $0x4] sm:$0xf]
          %v765 = vld [vmem:[#allocation7 + $0x8] sm:$0xf]
          %v766 = vld [vmem:[#allocation7 + $0xc] sm:$0xf]
          %v767 = vld [vmem:[%s5] sm:$0x1]
          %v769 = vlaneseq
          %v770 = vshrl.u32 %v769, 7
          %v771 = vsub.s32 0, %v770
          %v772 = vrot.slane %v767, %v771
          %v778 = vunpack.c.l.b16 %v763
          %v779 = vunpack.c.l.b16 %v764
          %v780 = vunpack.c.l.b16 %v765
          %v781 = vunpack.c.l.b16 %v766
          %v782 = vpack.c.b16 %v779, %v778
          %v783 = vpack.c.b16 %v781, %v780
          %vm786 = vcmask 261120
          %v788 = vsel %vm786, %v762, 0
          %790 = vmatprep.subr.bf16.mxu0 0
          %791 = vmatpush1.bf16.msra.mxu0 %v782
          %792 = vmatprep.subr.bf16.mxu0 0
          %793 = vmatpush1.bf16.msra.mxu0 %v783
          %794 = vmatprep.subr.bf16.mxu0 0
          %795 = vmatpush1.bf16.msra.mxu0 0
          %796 = vmatprep.subr.bf16.mxu0 0
          %797 = vmatpush1.bf16.msra.mxu0 0
          %798 = vmatprep.subr.bf16.mxu0 0
          %799 = vmatpush1.bf16.msra.mxu0 0
          %800 = vmatprep.subr.bf16.mxu0 0
          %801 = vmatpush1.bf16.msra.mxu0 0
          %802 = vmatprep.subr.bf16.mxu0 0
          %803 = vmatpush1.bf16.msra.mxu0 0
          %804 = vmatprep.subr.bf16.mxu0 0
          %805 = vmatpush1.bf16.msra.mxu0 0
          %806 = vmatprep.subr.bf16.mxu0 0
          %807 = vmatpush1.bf16.msra.mxu0 0
          %808 = vmatprep.subr.bf16.mxu0 0
          %809 = vmatpush1.bf16.msra.mxu0 0
          %810 = vmatprep.subr.bf16.mxu0 0
          %811 = vmatpush1.bf16.msra.mxu0 0
          %812 = vmatprep.subr.bf16.mxu0 0
          %813 = vmatpush1.bf16.msra.mxu0 0
          %814 = vmatprep.subr.bf16.mxu0 0
          %815 = vmatpush1.bf16.msra.mxu0 0
          %816 = vmatprep.subr.bf16.mxu0 0
          %817 = vmatpush1.bf16.msra.mxu0 0
          %818 = vmatprep.subr.bf16.mxu0 0
          %819 = vmatpush1.bf16.msra.mxu0 0
          %820 = vmatprep.subr.bf16.mxu0 0
          %821 = vmatpush1.bf16.msra.mxu0 0
          %822 = vmatprep.mubr.bf16.mxu0 0
          %823 = vmatmul.mubr.bf16.gmra.mrb[0].mxu0 %v788
          %v824 = vpop.f32.mrb[0].mxu0
          %v825 = vadd.f32 %v772, %v824
          %v826 = vpop.f32.mrb[0].mxu0
          %v827 = vpop.f32.mrb[0].mxu0
          %v828 = vadd.f32 %v772, %v827
          %v829 = vpop.f32.mrb[0].mxu0
          %830 = vdwg.mxu0
          %v831 = vpack.c.bf16 %v757, %v756
          %v832 = vld [vmem:[#allocation9] sm:$0xf]
          %v833 = vld [vmem:[#allocation9 + $0x4] sm:$0xf]
          %v834 = vld [vmem:[#allocation9 + $0x8] sm:$0xf]
          %v835 = vld [vmem:[#allocation9 + $0xc] sm:$0xf]
          %v836 = vld [vmem:[#allocation10] sm:$0x1]
          %v838 = vlaneseq
          %v839 = vshrl.u32 %v838, 7
          %v840 = vsub.s32 0, %v839
          %v841 = vrot.slane %v836, %v840
          %v847 = vunpack.c.l.b16 %v832
          %v848 = vunpack.c.l.b16 %v833
          %v849 = vunpack.c.l.b16 %v834
          %v850 = vunpack.c.l.b16 %v835
          %v851 = vpack.c.b16 %v848, %v847
          %v852 = vpack.c.b16 %v850, %v849
          %v856 = vsel %vm786, %v831, 0
          %858 = vmatprep.subr.bf16.mxu0 0
          %859 = vmatpush1.bf16.msra.mxu0 %v851
          %860 = vmatprep.subr.bf16.mxu0 0
          %861 = vmatpush1.bf16.msra.mxu0 %v852
          %862 = vmatprep.subr.bf16.mxu0 0
          %863 = vmatpush1.bf16.msra.mxu0 0
          %864 = vmatprep.subr.bf16.mxu0 0
          %865 = vmatpush1.bf16.msra.mxu0 0
          %866 = vmatprep.subr.bf16.mxu0 0
          %867 = vmatpush1.bf16.msra.mxu0 0
          %868 = vmatprep.subr.bf16.mxu0 0
          %869 = vmatpush1.bf16.msra.mxu0 0
          %870 = vmatprep.subr.bf16.mxu0 0
          %871 = vmatpush1.bf16.msra.mxu0 0
          %872 = vmatprep.subr.bf16.mxu0 0
          %873 = vmatpush1.bf16.msra.mxu0 0
          %874 = vmatprep.subr.bf16.mxu0 0
          %875 = vmatpush1.bf16.msra.mxu0 0
          %876 = vmatprep.subr.bf16.mxu0 0
          %877 = vmatpush1.bf16.msra.mxu0 0
          %878 = vmatprep.subr.bf16.mxu0 0
          %879 = vmatpush1.bf16.msra.mxu0 0
          %880 = vmatprep.subr.bf16.mxu0 0
          %881 = vmatpush1.bf16.msra.mxu0 0
          %882 = vmatprep.subr.bf16.mxu0 0
          %883 = vmatpush1.bf16.msra.mxu0 0
          %884 = vmatprep.subr.bf16.mxu0 0
          %885 = vmatpush1.bf16.msra.mxu0 0
          %886 = vmatprep.subr.bf16.mxu0 0
          %887 = vmatpush1.bf16.msra.mxu0 0
          %888 = vmatprep.subr.bf16.mxu0 0
          %889 = vmatpush1.bf16.msra.mxu0 0
          %890 = vmatprep.mubr.bf16.mxu0 0
          %891 = vmatmul.mubr.bf16.gmra.mrb[0].mxu0 %v856
          %v892 = vpop.f32.mrb[0].mxu0
          %v893 = vadd.f32 %v841, %v892
          %v894 = vpop.f32.mrb[0].mxu0
          %v895 = vpop.f32.mrb[0].mxu0
          %v896 = vadd.f32 %v841, %v895
          %v897 = vpop.f32.mrb[0].mxu0
          %898 = vdwg.mxu0
          %901 = vrot.lane.b32.xlu0 %v825, 120
          %v902 = vpop.permute.xlu0 %901
          %903 = vrot.lane.b32.xlu0 %v828, 120
          %v904 = vpop.permute.xlu0 %903
          %907 = vrot.lane.b32.xlu0 %v825, 112
          %v908 = vpop.permute.xlu0 %907
          %909 = vrot.lane.b32.xlu0 %v828, 112
          %v910 = vpop.permute.xlu0 %909
          %913 = vrot.lane.b32.xlu0 %v825, 104
          %v914 = vpop.permute.xlu0 %913
          %915 = vrot.lane.b32.xlu0 %v828, 104
          %v916 = vpop.permute.xlu0 %915
          %v919 = vpack.c.bf16 %v828, %v825
          %v920 = vpack.c.bf16 %v904, %v902
          %v921 = vpack.c.bf16 %v910, %v908
          %v922 = vpack.c.bf16 %v916, %v914
          %vm923 = vcmask 64512
          %924 = vst.msk [vmem:[#allocation2] sm:$0xff] %vm923, %v919
          %925 = vst.msk [vmem:[#allocation2 + $0x8] sm:$0xff] %vm923, %v920
          %926 = vst.msk [vmem:[#allocation2 + $0x10] sm:$0xff] %vm923, %v921
          %927 = vst.msk [vmem:[#allocation2 + $0x18] sm:$0xff] %vm923, %v922
          %930 = vrot.lane.b32.xlu0 %v893, 120
          %v931 = vpop.permute.xlu0 %930
          %932 = vrot.lane.b32.xlu0 %v896, 120
          %v933 = vpop.permute.xlu0 %932
          %936 = vrot.lane.b32.xlu0 %v893, 112
          %v937 = vpop.permute.xlu0 %936
          %938 = vrot.lane.b32.xlu0 %v896, 112
          %v939 = vpop.permute.xlu0 %938
          %942 = vrot.lane.b32.xlu0 %v893, 104
          %v943 = vpop.permute.xlu0 %942
          %944 = vrot.lane.b32.xlu0 %v896, 104
          %v945 = vpop.permute.xlu0 %944
          %v948 = vpack.c.bf16 %v896, %v893
          %v949 = vpack.c.bf16 %v933, %v931
          %v950 = vpack.c.bf16 %v939, %v937
          %v951 = vpack.c.bf16 %v945, %v943
          %952 = vst.msk [vmem:[#allocation3] sm:$0xff] %vm923, %v948
          %953 = vst.msk [vmem:[#allocation3 + $0x8] sm:$0xff] %vm923, %v949
          %954 = vst.msk [vmem:[#allocation3 + $0x10] sm:$0xff] %vm923, %v950
          %955 = vst.msk [vmem:[#allocation3 + $0x18] sm:$0xff] %vm923, %v951
        $region128: #{tpu_custom_call.1} parent=99 // pred_fallthru
          _
        %s956 = smul.u32 %s45, 8
        %s957 = scalar_lea.vmem %s750, %s956
        %v958 = vld [vmem:[%s957] sm:$0xff]
        %s959 = scalar_lea.vmem %s664, %s956 [#allocation4]
        %v960 = vld [vmem:[%s959] sm:$0xff]
        %v961 = vadd.f32 %v958, %v960
        %v962 = vpack.c.bf16 %v961, %v961
        %v963 = vld [vmem:[%s2] sm:$0xf]
        %v964 = vld [vmem:[%s2 + $0x4] sm:$0xf]
        %v965 = vld [vmem:[%s2 + $0x8] sm:$0xf]
        %v966 = vld [vmem:[%s2 + $0xc] sm:$0xf]
        %v967 = vld [vmem:[%s3] sm:$0x1]
        %v969 = vlaneseq
        %v970 = vshrl.u32 %v969, 7
        %v971 = vsub.s32 0, %v970
        %v972 = vrot.slane %v967, %v971
        %v978 = vunpack.c.l.b16 %v963
        %v979 = vunpack.c.l.b16 %v964
        %v980 = vunpack.c.l.b16 %v965
        %v981 = vunpack.c.l.b16 %v966
        %v982 = vpack.c.b16 %v979, %v978
        %v983 = vpack.c.b16 %v981, %v980
        %vm986 = vcmask 261120
        %v988 = vsel %vm986, %v962, 0
        %990 = vmatprep.subr.bf16.mxu0 0
        %991 = vmatpush1.bf16.msra.mxu0 %v982
        %992 = vmatprep.subr.bf16.mxu0 0
        %993 = vmatpush1.bf16.msra.mxu0 %v983
        %994 = vmatprep.subr.bf16.mxu0 0
        %995 = vmatpush1.bf16.msra.mxu0 0
        %996 = vmatprep.subr.bf16.mxu0 0
        %997 = vmatpush1.bf16.msra.mxu0 0
        %998 = vmatprep.subr.bf16.mxu0 0
        %999 = vmatpush1.bf16.msra.mxu0 0
        %1000 = vmatprep.subr.bf16.mxu0 0
        %1001 = vmatpush1.bf16.msra.mxu0 0
        %1002 = vmatprep.subr.bf16.mxu0 0
        %1003 = vmatpush1.bf16.msra.mxu0 0
        %1004 = vmatprep.subr.bf16.mxu0 0
        %1005 = vmatpush1.bf16.msra.mxu0 0
        %1006 = vmatprep.subr.bf16.mxu0 0
        %1007 = vmatpush1.bf16.msra.mxu0 0
        %1008 = vmatprep.subr.bf16.mxu0 0
        %1009 = vmatpush1.bf16.msra.mxu0 0
        %1010 = vmatprep.subr.bf16.mxu0 0
        %1011 = vmatpush1.bf16.msra.mxu0 0
        %1012 = vmatprep.subr.bf16.mxu0 0
        %1013 = vmatpush1.bf16.msra.mxu0 0
        %1014 = vmatprep.subr.bf16.mxu0 0
        %1015 = vmatpush1.bf16.msra.mxu0 0
        %1016 = vmatprep.subr.bf16.mxu0 0
        %1017 = vmatpush1.bf16.msra.mxu0 0
        %1018 = vmatprep.subr.bf16.mxu0 0
        %1019 = vmatpush1.bf16.msra.mxu0 0
        %1020 = vmatprep.subr.bf16.mxu0 0
        %1021 = vmatpush1.bf16.msra.mxu0 0
        %1022 = vmatprep.mubr.bf16.mxu0 0
        %1023 = vmatmul.mubr.bf16.gmra.mrb[0].mxu0 %v988
        %v1024 = vpop.f32.mrb[0].mxu0
        %v1025 = vadd.f32 %v972, %v1024
        %v1026 = vpop.f32.mrb[0].mxu0
        %v1027 = vpop.f32.mrb[0].mxu0
        %v1028 = vpop.f32.mrb[0].mxu0
        %1029 = vdwg.mxu0
        %1031 = vrot.lane.b32.xlu0 %v1025, 120
        %v1032 = vpop.permute.xlu0 %1031
        %1034 = vrot.lane.b32.xlu0 %v1025, 112
        %v1035 = vpop.permute.xlu0 %1034
        %1037 = vrot.lane.b32.xlu0 %v1025, 104
        %v1038 = vpop.permute.xlu0 %1037
        %v1040 = vpack.c.bf16 %v1025, %v1025
        %v1041 = vpack.c.bf16 %v1032, %v1032
        %v1042 = vpack.c.bf16 %v1035, %v1035
        %v1043 = vpack.c.bf16 %v1038, %v1038
        %v1044 = vld [vmem:[#allocation2] sm:$0xff]
        %v1045 = vld [vmem:[#allocation2 + $0x8] sm:$0xff]
        %v1046 = vld [vmem:[#allocation2 + $0x10] sm:$0xff]
        %v1047 = vld [vmem:[#allocation2 + $0x18] sm:$0xff]
        %vm1048 = vcmask 64512
        %v1050 = vsel %vm1048, %v1040, 0
        %v1053 = vsel %vm1048, %v1044, 0
        %1055 = vmatprep.subr.bf16.mxu0 0
        %1056 = vmatpush1.bf16.xpose.msra.mxu0 %v1053
        %1057 = vmatprep.subr.bf16.mxu0 0
        %1058 = vmatpush1.bf16.xpose.msra.mxu0 0
        %1059 = vmatprep.subr.bf16.mxu0 0
        %1060 = vmatpush1.bf16.xpose.msra.mxu0 0
        %1061 = vmatprep.subr.bf16.mxu0 0
        %1062 = vmatpush1.bf16.xpose.msra.mxu0 0
        %1063 = vmatprep.subr.bf16.mxu0 0
        %1064 = vmatpush1.bf16.xpose.msra.mxu0 0
        %1065 = vmatprep.subr.bf16.mxu0 0
        %1066 = vmatpush1.bf16.xpose.msra.mxu0 0
        %1067 = vmatprep.subr.bf16.mxu0 0
        %1068 = vmatpush1.bf16.xpose.msra.mxu0 0
        %1069 = vmatprep.subr.bf16.mxu0 0
        %1070 = vmatpush1.bf16.xpose.msra.mxu0 0
        %1071 = vmatprep.subr.bf16.mxu0 0
        %1072 = vmatpush1.bf16.xpose.msra.mxu0 0
        %1073 = vmatprep.subr.bf16.mxu0 0
        %1074 = vmatpush1.bf16.xpose.msra.mxu0 0
        %1075 = vmatprep.subr.bf16.mxu0 0
        %1076 = vmatpush1.bf16.xpose.msra.mxu0 0
        %1077 = vmatprep.subr.bf16.mxu0 0
        %1078 = vmatpush1.bf16.xpose.msra.mxu0 0
        %1079 = vmatprep.subr.bf16.mxu0 0
        %1080 = vmatpush1.bf16.xpose.msra.mxu0 0
        %1081 = vmatprep.subr.bf16.mxu0 0
        %1082 = vmatpush1.bf16.xpose.msra.mxu0 0
        %1083 = vmatprep.subr.bf16.mxu0 0
        %1084 = vmatpush1.bf16.xpose.msra.mxu0 0
        %1085 = vmatprep.subr.bf16.mxu0 0
        %1086 = vmatpush1.bf16.xpose.msra.mxu0 0
        %1087 = vmatprep.mubr.bf16.mxu0 0
        %1088 = vmatmul.mubr.bf16.gmra.mrb[0].mxu0 %v1050
        %v1089 = vpop.f32.mrb[0].mxu0
        %v1090 = vadd.f32 0.0, %v1089
        %v1091 = vpop.f32.mrb[0].mxu0
        %v1092 = vpop.f32.mrb[0].mxu0
        %v1093 = vpop.f32.mrb[0].mxu0
        %1094 = vdwg.mxu0
        %v1096 = vsel %vm1048, %v1041, 0
        %v1099 = vsel %vm1048, %v1045, 0
        %1101 = vmatprep.subr.bf16.mxu0 0
        %1102 = vmatpush1.bf16.xpose.msra.mxu0 %v1099
        %1103 = vmatprep.subr.bf16.mxu0 0
        %1104 = vmatpush1.bf16.xpose.msra.mxu0 0
        %1105 = vmatprep.subr.bf16.mxu0 0
        %1106 = vmatpush1.bf16.xpose.msra.mxu0 0
        %1107 = vmatprep.subr.bf16.mxu0 0
        %1108 = vmatpush1.bf16.xpose.msra.mxu0 0
        %1109 = vmatprep.subr.bf16.mxu0 0
        %1110 = vmatpush1.bf16.xpose.msra.mxu0 0
        %1111 = vmatprep.subr.bf16.mxu0 0
        %1112 = vmatpush1.bf16.xpose.msra.mxu0 0
        %1113 = vmatprep.subr.bf16.mxu0 0
        %1114 = vmatpush1.bf16.xpose.msra.mxu0 0
        %1115 = vmatprep.subr.bf16.mxu0 0
        %1116 = vmatpush1.bf16.xpose.msra.mxu0 0
        %1117 = vmatprep.subr.bf16.mxu0 0
        %1118 = vmatpush1.bf16.xpose.msra.mxu0 0
        %1119 = vmatprep.subr.bf16.mxu0 0
        %1120 = vmatpush1.bf16.xpose.msra.mxu0 0
        %1121 = vmatprep.subr.bf16.mxu0 0
        %1122 = vmatpush1.bf16.xpose.msra.mxu0 0
        %1123 = vmatprep.subr.bf16.mxu0 0
        %1124 = vmatpush1.bf16.xpose.msra.mxu0 0
        %1125 = vmatprep.subr.bf16.mxu0 0
        %1126 = vmatpush1.bf16.xpose.msra.mxu0 0
        %1127 = vmatprep.subr.bf16.mxu0 0
        %1128 = vmatpush1.bf16.xpose.msra.mxu0 0
        %1129 = vmatprep.subr.bf16.mxu0 0
        %1130 = vmatpush1.bf16.xpose.msra.mxu0 0
        %1131 = vmatprep.subr.bf16.mxu0 0
        %1132 = vmatpush1.bf16.xpose.msra.mxu0 0
        %1133 = vmatprep.mubr.bf16.mxu0 0
        %1134 = vmatmul.mubr.bf16.gmra.mrb[0].mxu0 %v1096
        %v1135 = vpop.f32.mrb[0].mxu0
        %v1136 = vadd.f32 0.0, %v1135
        %v1137 = vpop.f32.mrb[0].mxu0
        %v1138 = vpop.f32.mrb[0].mxu0
        %v1139 = vpop.f32.mrb[0].mxu0
        %1140 = vdwg.mxu0
        %v1142 = vsel %vm1048, %v1042, 0
        %v1145 = vsel %vm1048, %v1046, 0
        %1147 = vmatprep.subr.bf16.mxu0 0
        %1148 = vmatpush1.bf16.xpose.msra.mxu0 %v1145
        %1149 = vmatprep.subr.bf16.mxu0 0
        %1150 = vmatpush1.bf16.xpose.msra.mxu0 0
        %1151 = vmatprep.subr.bf16.mxu0 0
        %1152 = vmatpush1.bf16.xpose.msra.mxu0 0
        %1153 = vmatprep.subr.bf16.mxu0 0
        %1154 = vmatpush1.bf16.xpose.msra.mxu0 0
        %1155 = vmatprep.subr.bf16.mxu0 0
        %1156 = vmatpush1.bf16.xpose.msra.mxu0 0
        %1157 = vmatprep.subr.bf16.mxu0 0
        %1158 = vmatpush1.bf16.xpose.msra.mxu0 0
        %1159 = vmatprep.subr.bf16.mxu0 0
        %1160 = vmatpush1.bf16.xpose.msra.mxu0 0
        %1161 = vmatprep.subr.bf16.mxu0 0
        %1162 = vmatpush1.bf16.xpose.msra.mxu0 0
        %1163 = vmatprep.subr.bf16.mxu0 0
        %1164 = vmatpush1.bf16.xpose.msra.mxu0 0
        %1165 = vmatprep.subr.bf16.mxu0 0
        %1166 = vmatpush1.bf16.xpose.msra.mxu0 0
        %1167 = vmatprep.subr.bf16.mxu0 0
        %1168 = vmatpush1.bf16.xpose.msra.mxu0 0
        %1169 = vmatprep.subr.bf16.mxu0 0
        %1170 = vmatpush1.bf16.xpose.msra.mxu0 0
        %1171 = vmatprep.subr.bf16.mxu0 0
        %1172 = vmatpush1.bf16.xpose.msra.mxu0 0
        %1173 = vmatprep.subr.bf16.mxu0 0
        %1174 = vmatpush1.bf16.xpose.msra.mxu0 0
        %1175 = vmatprep.subr.bf16.mxu0 0
        %1176 = vmatpush1.bf16.xpose.msra.mxu0 0
        %1177 = vmatprep.subr.bf16.mxu0 0
        %1178 = vmatpush1.bf16.xpose.msra.mxu0 0
        %1179 = vmatprep.mubr.bf16.mxu0 0
        %1180 = vmatmul.mubr.bf16.gmra.mrb[0].mxu0 %v1142
        %v1181 = vpop.f32.mrb[0].mxu0
        %v1182 = vadd.f32 0.0, %v1181
        %v1183 = vpop.f32.mrb[0].mxu0
        %v1184 = vpop.f32.mrb[0].mxu0
        %v1185 = vpop.f32.mrb[0].mxu0
        %1186 = vdwg.mxu0
        %v1188 = vsel %vm1048, %v1043, 0
        %v1191 = vsel %vm1048, %v1047, 0
        %1193 = vmatprep.subr.bf16.mxu0 0
        %1194 = vmatpush1.bf16.xpose.msra.mxu0 %v1191
        %1195 = vmatprep.subr.bf16.mxu0 0
        %1196 = vmatpush1.bf16.xpose.msra.mxu0 0
        %1197 = vmatprep.subr.bf16.mxu0 0
        %1198 = vmatpush1.bf16.xpose.msra.mxu0 0
        %1199 = vmatprep.subr.bf16.mxu0 0
        %1200 = vmatpush1.bf16.xpose.msra.mxu0 0
        %1201 = vmatprep.subr.bf16.mxu0 0
        %1202 = vmatpush1.bf16.xpose.msra.mxu0 0
        %1203 = vmatprep.subr.bf16.mxu0 0
        %1204 = vmatpush1.bf16.xpose.msra.mxu0 0
        %1205 = vmatprep.subr.bf16.mxu0 0
        %1206 = vmatpush1.bf16.xpose.msra.mxu0 0
        %1207 = vmatprep.subr.bf16.mxu0 0
        %1208 = vmatpush1.bf16.xpose.msra.mxu0 0
        %1209 = vmatprep.subr.bf16.mxu0 0
        %1210 = vmatpush1.bf16.xpose.msra.mxu0 0
        %1211 = vmatprep.subr.bf16.mxu0 0
        %1212 = vmatpush1.bf16.xpose.msra.mxu0 0
        %1213 = vmatprep.subr.bf16.mxu0 0
        %1214 = vmatpush1.bf16.xpose.msra.mxu0 0
        %1215 = vmatprep.subr.bf16.mxu0 0
        %1216 = vmatpush1.bf16.xpose.msra.mxu0 0
        %1217 = vmatprep.subr.bf16.mxu0 0
        %1218 = vmatpush1.bf16.xpose.msra.mxu0 0
        %1219 = vmatprep.subr.bf16.mxu0 0
        %1220 = vmatpush1.bf16.xpose.msra.mxu0 0
        %1221 = vmatprep.subr.bf16.mxu0 0
        %1222 = vmatpush1.bf16.xpose.msra.mxu0 0
        %1223 = vmatprep.subr.bf16.mxu0 0
        %1224 = vmatpush1.bf16.xpose.msra.mxu0 0
        %1225 = vmatprep.mubr.bf16.mxu0 0
        %1226 = vmatmul.mubr.bf16.gmra.mrb[0].mxu0 %v1188
        %v1227 = vpop.f32.mrb[0].mxu0
        %v1228 = vadd.f32 0.0, %v1227
        %v1229 = vpop.f32.mrb[0].mxu0
        %v1230 = vpop.f32.mrb[0].mxu0
        %v1231 = vpop.f32.mrb[0].mxu0
        %1232 = vdwg.mxu0
        %vm1233 = vcmask 130048
        %v1234 = vsel %vm1233, %v1090, -inf
        %1235 = vmax.xlane.f32.xlu0 %v1234
        %v1236 = vpop.xlane.xlu0 %1235
        %v1237 = vsel %vm1233, %v1136, -inf
        %1238 = vmax.xlane.f32.xlu0 %v1237
        %v1239 = vpop.xlane.xlu0 %1238
        %v1240 = vsel %vm1233, %v1182, -inf
        %1241 = vmax.xlane.f32.xlu0 %v1240
        %v1242 = vpop.xlane.xlu0 %1241
        %v1243 = vsel %vm1233, %v1228, -inf
        %1244 = vmax.xlane.f32.xlu0 %v1243
        %v1245 = vpop.xlane.xlu0 %1244
        %v1246 = vsub.f32 %v1090, %v1236
        %v1247 = vsub.f32 %v1136, %v1239
        %v1248 = vsub.f32 %v1182, %v1242
        %v1249 = vsub.f32 %v1228, %v1245
        %v1250 = vmul.f32 %v1246, 1.442695
        %v1251 = vpow.pop %v1250
        %v1252 = vmul.f32 %v1247, 1.442695
        %v1253 = vpow.pop %v1252
        %v1254 = vmul.f32 %v1248, 1.442695
        %v1255 = vpow.pop %v1254
        %v1256 = vmul.f32 %v1249, 1.442695
        %v1257 = vpow.pop %v1256
        %v1258 = vsel %vm1233, %v1251, 0.0
        %1259 = vadd.xlane.f32.xlu0 %v1258
        %v1260 = vpop.xlane.xlu0 %1259
        %v1261 = vsel %vm1233, %v1253, 0.0
        %1262 = vadd.xlane.f32.xlu0 %v1261
        %v1263 = vpop.xlane.xlu0 %1262
        %v1264 = vsel %vm1233, %v1255, 0.0
        %1265 = vadd.xlane.f32.xlu0 %v1264
        %v1266 = vpop.xlane.xlu0 %1265
        %v1267 = vsel %vm1233, %v1257, 0.0
        %1268 = vadd.xlane.f32.xlu0 %v1267
        %v1269 = vpop.xlane.xlu0 %1268
        %v1270 = vrcp.pop %v1260
        %v1271 = vrcp.pop %v1263
        %v1272 = vrcp.pop %v1266
        %v1273 = vrcp.pop %v1269
        %v1274 = vmul.f32 %v1251, %v1270
        %v1275 = vmul.f32 %v1253, %v1271
        %v1276 = vmul.f32 %v1255, %v1272
        %v1277 = vmul.f32 %v1257, %v1273
        %v1278 = vpack.c.bf16 %v1274, %v1274
        %v1279 = vpack.c.bf16 %v1275, %v1275
        %v1280 = vpack.c.bf16 %v1276, %v1276
        %v1281 = vpack.c.bf16 %v1277, %v1277
        %v1282 = vld [vmem:[#allocation3] sm:$0xff]
        %v1283 = vld [vmem:[#allocation3 + $0x8] sm:$0xff]
        %v1284 = vld [vmem:[#allocation3 + $0x10] sm:$0xff]
        %v1285 = vld [vmem:[#allocation3 + $0x18] sm:$0xff]
        %v1287 = vsel %vm1233, %v1278, 0
        %1289 = vmatprep.subr.bf16.mxu0 0
        %1290 = vmatpush1.bf16.msra.mxu0 %v1282
        %1291 = vmatprep.subr.bf16.mxu0 0
        %1292 = vmatpush1.bf16.msra.mxu0 0
        %1293 = vmatprep.subr.bf16.mxu0 0
        %1294 = vmatpush1.bf16.msra.mxu0 0
        %1295 = vmatprep.subr.bf16.mxu0 0
        %1296 = vmatpush1.bf16.msra.mxu0 0
        %1297 = vmatprep.subr.bf16.mxu0 0
        %1298 = vmatpush1.bf16.msra.mxu0 0
        %1299 = vmatprep.subr.bf16.mxu0 0
        %1300 = vmatpush1.bf16.msra.mxu0 0
        %1301 = vmatprep.subr.bf16.mxu0 0
        %1302 = vmatpush1.bf16.msra.mxu0 0
        %1303 = vmatprep.subr.bf16.mxu0 0
        %1304 = vmatpush1.bf16.msra.mxu0 0
        %1305 = vmatprep.subr.bf16.mxu0 0
        %1306 = vmatpush1.bf16.msra.mxu0 0
        %1307 = vmatprep.subr.bf16.mxu0 0
        %1308 = vmatpush1.bf16.msra.mxu0 0
        %1309 = vmatprep.subr.bf16.mxu0 0
        %1310 = vmatpush1.bf16.msra.mxu0 0
        %1311 = vmatprep.subr.bf16.mxu0 0
        %1312 = vmatpush1.bf16.msra.mxu0 0
        %1313 = vmatprep.subr.bf16.mxu0 0
        %1314 = vmatpush1.bf16.msra.mxu0 0
        %1315 = vmatprep.subr.bf16.mxu0 0
        %1316 = vmatpush1.bf16.msra.mxu0 0
        %1317 = vmatprep.subr.bf16.mxu0 0
        %1318 = vmatpush1.bf16.msra.mxu0 0
        %1319 = vmatprep.subr.bf16.mxu0 0
        %1320 = vmatpush1.bf16.msra.mxu0 0
        %1321 = vmatprep.mubr.bf16.mxu0 0
        %1322 = vmatmul.mubr.bf16.gmra.mrb[0].mxu0 %v1287
        %v1323 = vpop.f32.mrb[0].mxu0
        %v1324 = vadd.f32 0.0, %v1323
        %v1325 = vpop.f32.mrb[0].mxu0
        %v1326 = vpop.f32.mrb[0].mxu0
        %v1327 = vpop.f32.mrb[0].mxu0
        %1328 = vdwg.mxu0
        %v1330 = vsel %vm1233, %v1279, 0
        %1332 = vmatprep.subr.bf16.mxu0 0
        %1333 = vmatpush1.bf16.msra.mxu0 %v1283
        %1334 = vmatprep.subr.bf16.mxu0 0
        %1335 = vmatpush1.bf16.msra.mxu0 0
        %1336 = vmatprep.subr.bf16.mxu0 0
        %1337 = vmatpush1.bf16.msra.mxu0 0
        %1338 = vmatprep.subr.bf16.mxu0 0
        %1339 = vmatpush1.bf16.msra.mxu0 0
        %1340 = vmatprep.subr.bf16.mxu0 0
        %1341 = vmatpush1.bf16.msra.mxu0 0
        %1342 = vmatprep.subr.bf16.mxu0 0
        %1343 = vmatpush1.bf16.msra.mxu0 0
        %1344 = vmatprep.subr.bf16.mxu0 0
        %1345 = vmatpush1.bf16.msra.mxu0 0
        %1346 = vmatprep.subr.bf16.mxu0 0
        %1347 = vmatpush1.bf16.msra.mxu0 0
        %1348 = vmatprep.subr.bf16.mxu0 0
        %1349 = vmatpush1.bf16.msra.mxu0 0
        %1350 = vmatprep.subr.bf16.mxu0 0
        %1351 = vmatpush1.bf16.msra.mxu0 0
        %1352 = vmatprep.subr.bf16.mxu0 0
        %1353 = vmatpush1.bf16.msra.mxu0 0
        %1354 = vmatprep.subr.bf16.mxu0 0
        %1355 = vmatpush1.bf16.msra.mxu0 0
        %1356 = vmatprep.subr.bf16.mxu0 0
        %1357 = vmatpush1.bf16.msra.mxu0 0
        %1358 = vmatprep.subr.bf16.mxu0 0
        %1359 = vmatpush1.bf16.msra.mxu0 0
        %1360 = vmatprep.subr.bf16.mxu0 0
        %1361 = vmatpush1.bf16.msra.mxu0 0
        %1362 = vmatprep.subr.bf16.mxu0 0
        %1363 = vmatpush1.bf16.msra.mxu0 0
        %1364 = vmatprep.mubr.bf16.mxu0 0
        %1365 = vmatmul.mubr.bf16.gmra.mrb[0].mxu0 %v1330
        %v1366 = vpop.f32.mrb[0].mxu0
        %v1367 = vadd.f32 0.0, %v1366
        %v1368 = vpop.f32.mrb[0].mxu0
        %v1369 = vpop.f32.mrb[0].mxu0
        %v1370 = vpop.f32.mrb[0].mxu0
        %1371 = vdwg.mxu0
        %v1373 = vsel %vm1233, %v1280, 0
        %1375 = vmatprep.subr.bf16.mxu0 0
        %1376 = vmatpush1.bf16.msra.mxu0 %v1284
        %1377 = vmatprep.subr.bf16.mxu0 0
        %1378 = vmatpush1.bf16.msra.mxu0 0
        %1379 = vmatprep.subr.bf16.mxu0 0
        %1380 = vmatpush1.bf16.msra.mxu0 0
        %1381 = vmatprep.subr.bf16.mxu0 0
        %1382 = vmatpush1.bf16.msra.mxu0 0
        %1383 = vmatprep.subr.bf16.mxu0 0
        %1384 = vmatpush1.bf16.msra.mxu0 0
        %1385 = vmatprep.subr.bf16.mxu0 0
        %1386 = vmatpush1.bf16.msra.mxu0 0
        %1387 = vmatprep.subr.bf16.mxu0 0
        %1388 = vmatpush1.bf16.msra.mxu0 0
        %1389 = vmatprep.subr.bf16.mxu0 0
        %1390 = vmatpush1.bf16.msra.mxu0 0
        %1391 = vmatprep.subr.bf16.mxu0 0
        %1392 = vmatpush1.bf16.msra.mxu0 0
        %1393 = vmatprep.subr.bf16.mxu0 0
        %1394 = vmatpush1.bf16.msra.mxu0 0
        %1395 = vmatprep.subr.bf16.mxu0 0
        %1396 = vmatpush1.bf16.msra.mxu0 0
        %1397 = vmatprep.subr.bf16.mxu0 0
        %1398 = vmatpush1.bf16.msra.mxu0 0
        %1399 = vmatprep.subr.bf16.mxu0 0
        %1400 = vmatpush1.bf16.msra.mxu0 0
        %1401 = vmatprep.subr.bf16.mxu0 0
        %1402 = vmatpush1.bf16.msra.mxu0 0
        %1403 = vmatprep.subr.bf16.mxu0 0
        %1404 = vmatpush1.bf16.msra.mxu0 0
        %1405 = vmatprep.subr.bf16.mxu0 0
        %1406 = vmatpush1.bf16.msra.mxu0 0
        %1407 = vmatprep.mubr.bf16.mxu0 0
        %1408 = vmatmul.mubr.bf16.gmra.mrb[0].mxu0 %v1373
        %v1409 = vpop.f32.mrb[0].mxu0
        %v1410 = vadd.f32 0.0, %v1409
        %v1411 = vpop.f32.mrb[0].mxu0
        %v1412 = vpop.f32.mrb[0].mxu0
        %v1413 = vpop.f32.mrb[0].mxu0
        %1414 = vdwg.mxu0
        %v1416 = vsel %vm1233, %v1281, 0
        %1418 = vmatprep.subr.bf16.mxu0 0
        %1419 = vmatpush1.bf16.msra.mxu0 %v1285
        %1420 = vmatprep.subr.bf16.mxu0 0
        %1421 = vmatpush1.bf16.msra.mxu0 0
        %1422 = vmatprep.subr.bf16.mxu0 0
        %1423 = vmatpush1.bf16.msra.mxu0 0
        %1424 = vmatprep.subr.bf16.mxu0 0
        %1425 = vmatpush1.bf16.msra.mxu0 0
        %1426 = vmatprep.subr.bf16.mxu0 0
        %1427 = vmatpush1.bf16.msra.mxu0 0
        %1428 = vmatprep.subr.bf16.mxu0 0
        %1429 = vmatpush1.bf16.msra.mxu0 0
        %1430 = vmatprep.subr.bf16.mxu0 0
        %1431 = vmatpush1.bf16.msra.mxu0 0
        %1432 = vmatprep.subr.bf16.mxu0 0
        %1433 = vmatpush1.bf16.msra.mxu0 0
        %1434 = vmatprep.subr.bf16.mxu0 0
        %1435 = vmatpush1.bf16.msra.mxu0 0
        %1436 = vmatprep.subr.bf16.mxu0 0
        %1437 = vmatpush1.bf16.msra.mxu0 0
        %1438 = vmatprep.subr.bf16.mxu0 0
        %1439 = vmatpush1.bf16.msra.mxu0 0
        %1440 = vmatprep.subr.bf16.mxu0 0
        %1441 = vmatpush1.bf16.msra.mxu0 0
        %1442 = vmatprep.subr.bf16.mxu0 0
        %1443 = vmatpush1.bf16.msra.mxu0 0
        %1444 = vmatprep.subr.bf16.mxu0 0
        %1445 = vmatpush1.bf16.msra.mxu0 0
        %1446 = vmatprep.subr.bf16.mxu0 0
        %1447 = vmatpush1.bf16.msra.mxu0 0
        %1448 = vmatprep.subr.bf16.mxu0 0
        %1449 = vmatpush1.bf16.msra.mxu0 0
        %1450 = vmatprep.mubr.bf16.mxu0 0
        %1451 = vmatmul.mubr.bf16.gmra.mrb[0].mxu0 %v1416
        %v1452 = vpop.f32.mrb[0].mxu0
        %v1453 = vadd.f32 0.0, %v1452
        %v1454 = vpop.f32.mrb[0].mxu0
        %v1455 = vpop.f32.mrb[0].mxu0
        %v1456 = vpop.f32.mrb[0].mxu0
        %1457 = vdwg.mxu0
        %1459 = vrot.lane.b32.xlu0 %v1367, 8
        %v1460 = vpop.permute.xlu0 %1459
        %1463 = vrot.lane.b32.xlu0 %v1410, 16
        %v1464 = vpop.permute.xlu0 %1463
        %1467 = vrot.lane.b32.xlu0 %v1453, 24
        %v1468 = vpop.permute.xlu0 %1467
        %v1470 = vsel %vm1048, %v1324, %v1460
        %v1471 = vsel %vm1233, %v1470, %v1464
        %vm1472 = vcmask 195584
        %v1473 = vsel %vm1472, %v1471, %v1468
        %v1474 = vpack.c.bf16 %v1473, %v1473
        %v1475 = vld [vmem:[#allocation12] sm:$0xf]
        %v1476 = vld [vmem:[#allocation12 + $0x4] sm:$0xf]
        %v1477 = vld [vmem:[#allocation12 + $0x8] sm:$0xf]
        %v1478 = vld [vmem:[#allocation12 + $0xc] sm:$0xf]
        %v1479 = vld [vmem:[#allocation13] sm:$0x1]
        %v1481 = vlaneseq
        %v1482 = vshrl.u32 %v1481, 7
        %v1483 = vsub.s32 0, %v1482
        %v1484 = vrot.slane %v1479, %v1483
        %v1490 = vunpack.c.l.b16 %v1475
        %v1491 = vunpack.c.l.b16 %v1476
        %v1492 = vunpack.c.l.b16 %v1477
        %v1493 = vunpack.c.l.b16 %v1478
        %v1494 = vpack.c.b16 %v1491, %v1490
        %v1495 = vpack.c.b16 %v1493, %v1492
        %v1499 = vsel %vm986, %v1474, 0
        %1501 = vmatprep.subr.bf16.mxu0 0
        %1502 = vmatpush1.bf16.msra.mxu0 %v1494
        %1503 = vmatprep.subr.bf16.mxu0 0
        %1504 = vmatpush1.bf16.msra.mxu0 %v1495
        %1505 = vmatprep.subr.bf16.mxu0 0
        %1506 = vmatpush1.bf16.msra.mxu0 0
        %1507 = vmatprep.subr.bf16.mxu0 0
        %1508 = vmatpush1.bf16.msra.mxu0 0
        %1509 = vmatprep.subr.bf16.mxu0 0
        %1510 = vmatpush1.bf16.msra.mxu0 0
        %1511 = vmatprep.subr.bf16.mxu0 0
        %1512 = vmatpush1.bf16.msra.mxu0 0
        %1513 = vmatprep.subr.bf16.mxu0 0
        %1514 = vmatpush1.bf16.msra.mxu0 0
        %1515 = vmatprep.subr.bf16.mxu0 0
        %1516 = vmatpush1.bf16.msra.mxu0 0
        %1517 = vmatprep.subr.bf16.mxu0 0
        %1518 = vmatpush1.bf16.msra.mxu0 0
        %1519 = vmatprep.subr.bf16.mxu0 0
        %1520 = vmatpush1.bf16.msra.mxu0 0
        %1521 = vmatprep.subr.bf16.mxu0 0
        %1522 = vmatpush1.bf16.msra.mxu0 0
        %1523 = vmatprep.subr.bf16.mxu0 0
        %1524 = vmatpush1.bf16.msra.mxu0 0
        %1525 = vmatprep.subr.bf16.mxu0 0
        %1526 = vmatpush1.bf16.msra.mxu0 0
        %1527 = vmatprep.subr.bf16.mxu0 0
        %1528 = vmatpush1.bf16.msra.mxu0 0
        %1529 = vmatprep.subr.bf16.mxu0 0
        %1530 = vmatpush1.bf16.msra.mxu0 0
        %1531 = vmatprep.subr.bf16.mxu0 0
        %1532 = vmatpush1.bf16.msra.mxu0 0
        %1533 = vmatprep.mubr.bf16.mxu0 0
        %1534 = vmatmul.mubr.bf16.gmra.mrb[0].mxu0 %v1499
        %v1535 = vpop.f32.mrb[0].mxu0
        %v1536 = vadd.f32 %v1484, %v1535
        %v1537 = vpop.f32.mrb[0].mxu0
        %v1538 = vpop.f32.mrb[0].mxu0
        %v1539 = vpop.f32.mrb[0].mxu0
        %1540 = vdwg.mxu0
        %v1541 = vadd.f32 %v958, %v1536
        %v1542 = vld [vmem:[%s10] sm:$0x1]
        %v1543 = vld [vmem:[%s11] sm:$0x1]
        %v1544 = vsel %vm986, %v1541, 0.0
        %1545 = vadd.xlane.f32.xlu0 %v1544
        %v1546 = vpop.xlane.xlu0 %1545
        %v1547 = vrcp.pop 32.0
        %v1548 = vmul.f32 %v1546, %v1547
        %v1549 = vsub.f32 %v1541, %v1548
        %v1550 = vmul.f32 %v1549, %v1549
        %v1551 = vsel %vm986, %v1550, 0.0
        %1552 = vadd.xlane.f32.xlu0 %v1551
        %v1553 = vpop.xlane.xlu0 %1552
        %v1554 = vmul.f32 %v1553, %v1547
        %v1555 = vadd.f32 %v1554, 1e-05
        %v1556 = vrsqrt.pop %v1555
        %v1557 = vmul.f32 %v1549, %v1556
        %v1559 = vlaneseq
        %v1560 = vshrl.u32 %v1559, 7
        %v1561 = vsub.s32 0, %v1560
        %v1562 = vrot.slane %v1542, %v1561
        %v1564 = vmul.f32 %v1557, %v1562
        %v1566 = vlaneseq
        %v1567 = vshrl.u32 %v1566, 7
        %v1568 = vsub.s32 0, %v1567
        %v1569 = vrot.slane %v1543, %v1568
        %v1571 = vadd.f32 %v1564, %v1569
        %v1572 = vpack.c.bf16 %v1571, %v1571
        %v1573 = vld [vmem:[%s12] sm:$0xf]
        %v1574 = vld [vmem:[%s12 + $0x4] sm:$0xf]
        %v1575 = vld [vmem:[%s12 + $0x8] sm:$0xf]
        %v1576 = vld [vmem:[%s12 + $0xc] sm:$0xf]
        %v1577 = vld [vmem:[%s13] sm:$0x1]
        %v1579 = vlaneseq
        %v1580 = vshrl.u32 %v1579, 7
        %v1581 = vsub.s32 0, %v1580
        %v1582 = vrot.slane %v1577, %v1581
        %v1588 = vunpack.c.l.b16 %v1573
        %v1589 = vunpack.c.l.b16 %v1574
        %v1590 = vunpack.c.l.b16 %v1575
        %v1591 = vunpack.c.l.b16 %v1576
        %v1592 = vpack.c.b16 %v1589, %v1588
        %v1593 = vpack.c.b16 %v1591, %v1590
        %v1597 = vsel %vm986, %v1572, 0
        %1599 = vmatprep.subr.bf16.mxu0 0
        %1600 = vmatpush1.bf16.msra.mxu0 %v1592
        %1601 = vmatprep.subr.bf16.mxu0 0
        %1602 = vmatpush1.bf16.msra.mxu0 %v1593
        %1603 = vmatprep.subr.bf16.mxu0 0
        %1604 = vmatpush1.bf16.msra.mxu0 0
        %1605 = vmatprep.subr.bf16.mxu0 0
        %1606 = vmatpush1.bf16.msra.mxu0 0
        %1607 = vmatprep.subr.bf16.mxu0 0
        %1608 = vmatpush1.bf16.msra.mxu0 0
        %1609 = vmatprep.subr.bf16.mxu0 0
        %1610 = vmatpush1.bf16.msra.mxu0 0
        %1611 = vmatprep.subr.bf16.mxu0 0
        %1612 = vmatpush1.bf16.msra.mxu0 0
        %1613 = vmatprep.subr.bf16.mxu0 0
        %1614 = vmatpush1.bf16.msra.mxu0 0
        %1615 = vmatprep.subr.bf16.mxu0 0
        %1616 = vmatpush1.bf16.msra.mxu0 0
        %1617 = vmatprep.subr.bf16.mxu0 0
        %1618 = vmatpush1.bf16.msra.mxu0 0
        %1619 = vmatprep.subr.bf16.mxu0 0
        %1620 = vmatpush1.bf16.msra.mxu0 0
        %1621 = vmatprep.subr.bf16.mxu0 0
        %1622 = vmatpush1.bf16.msra.mxu0 0
        %1623 = vmatprep.subr.bf16.mxu0 0
        %1624 = vmatpush1.bf16.msra.mxu0 0
        %1625 = vmatprep.subr.bf16.mxu0 0
        %1626 = vmatpush1.bf16.msra.mxu0 0
        %1627 = vmatprep.subr.bf16.mxu0 0
        %1628 = vmatpush1.bf16.msra.mxu0 0
        %1629 = vmatprep.subr.bf16.mxu0 0
        %1630 = vmatpush1.bf16.msra.mxu0 0
        %1631 = vmatprep.mubr.bf16.mxu0 0
        %1632 = vmatmul.mubr.bf16.gmra.mrb[0].mxu0 %v1597
        %v1633 = vpop.f32.mrb[0].mxu0
        %v1634 = vadd.f32 %v1582, %v1633
        %v1635 = vpop.f32.mrb[0].mxu0
        %v1636 = vpop.f32.mrb[0].mxu0
        %v1637 = vpop.f32.mrb[0].mxu0
        %1638 = vdwg.mxu0
        %v1639 = vmax.f32 %v1634, 0.0
        %v1640 = vpack.c.bf16 %v1639, %v1639
        %v1641 = vld [vmem:[%s14] sm:$0xf]
        %v1642 = vld [vmem:[%s14 + $0x4] sm:$0xf]
        %v1643 = vld [vmem:[%s14 + $0x8] sm:$0xf]
        %v1644 = vld [vmem:[%s14 + $0xc] sm:$0xf]
        %v1645 = vld [vmem:[%s14 + $0x10] sm:$0xf]
        %v1646 = vld [vmem:[%s14 + $0x14] sm:$0xf]
        %v1647 = vld [vmem:[%s14 + $0x18] sm:$0xf]
        %v1648 = vld [vmem:[%s14 + $0x1c] sm:$0xf]
        %v1649 = vld [vmem:[%s15] sm:$0x1]
        %v1651 = vlaneseq
        %v1652 = vshrl.u32 %v1651, 7
        %v1653 = vsub.s32 0, %v1652
        %v1654 = vrot.slane %v1649, %v1653
        %v1664 = vunpack.c.l.b16 %v1641
        %v1665 = vunpack.c.l.b16 %v1642
        %v1666 = vunpack.c.l.b16 %v1643
        %v1667 = vunpack.c.l.b16 %v1644
        %v1668 = vunpack.c.l.b16 %v1645
        %v1669 = vunpack.c.l.b16 %v1646
        %v1670 = vunpack.c.l.b16 %v1647
        %v1671 = vunpack.c.l.b16 %v1648
        %v1672 = vpack.c.b16 %v1665, %v1664
        %v1673 = vpack.c.b16 %v1667, %v1666
        %v1674 = vpack.c.b16 %v1669, %v1668
        %v1675 = vpack.c.b16 %v1671, %v1670
        %vm1680 = vcmask 523264
        %v1682 = vsel %vm1680, %v1640, 0
        %1684 = vmatprep.subr.bf16.mxu0 0
        %1685 = vmatpush1.bf16.msra.mxu0 %v1672
        %1686 = vmatprep.subr.bf16.mxu0 0
        %1687 = vmatpush1.bf16.msra.mxu0 %v1673
        %1688 = vmatprep.subr.bf16.mxu0 0
        %1689 = vmatpush1.bf16.msra.mxu0 %v1674
        %1690 = vmatprep.subr.bf16.mxu0 0
        %1691 = vmatpush1.bf16.msra.mxu0 %v1675
        %1692 = vmatprep.subr.bf16.mxu0 0
        %1693 = vmatpush1.bf16.msra.mxu0 0
        %1694 = vmatprep.subr.bf16.mxu0 0
        %1695 = vmatpush1.bf16.msra.mxu0 0
        %1696 = vmatprep.subr.bf16.mxu0 0
        %1697 = vmatpush1.bf16.msra.mxu0 0
        %1698 = vmatprep.subr.bf16.mxu0 0
        %1699 = vmatpush1.bf16.msra.mxu0 0
        %1700 = vmatprep.subr.bf16.mxu0 0
        %1701 = vmatpush1.bf16.msra.mxu0 0
        %1702 = vmatprep.subr.bf16.mxu0 0
        %1703 = vmatpush1.bf16.msra.mxu0 0
        %1704 = vmatprep.subr.bf16.mxu0 0
        %1705 = vmatpush1.bf16.msra.mxu0 0
        %1706 = vmatprep.subr.bf16.mxu0 0
        %1707 = vmatpush1.bf16.msra.mxu0 0
        %1708 = vmatprep.subr.bf16.mxu0 0
        %1709 = vmatpush1.bf16.msra.mxu0 0
        %1710 = vmatprep.subr.bf16.mxu0 0
        %1711 = vmatpush1.bf16.msra.mxu0 0
        %1712 = vmatprep.subr.bf16.mxu0 0
        %1713 = vmatpush1.bf16.msra.mxu0 0
        %1714 = vmatprep.subr.bf16.mxu0 0
        %1715 = vmatpush1.bf16.msra.mxu0 0
        %1716 = vmatprep.mubr.bf16.mxu0 0
        %1717 = vmatmul.mubr.bf16.gmra.mrb[0].mxu0 %v1682
        %v1718 = vpop.f32.mrb[0].mxu0
        %v1719 = vadd.f32 %v1654, %v1718
        %v1720 = vpop.f32.mrb[0].mxu0
        %v1721 = vpop.f32.mrb[0].mxu0
        %v1722 = vpop.f32.mrb[0].mxu0
        %1723 = vdwg.mxu0
        %v1724 = vadd.f32 %v1571, %v1719
        %v1725 = vld [vmem:[%s16] sm:$0x1]
        %v1726 = vld [vmem:[%s17] sm:$0x1]
        %v1727 = vsel %vm986, %v1724, 0.0
        %1728 = vadd.xlane.f32.xlu0 %v1727
        %v1729 = vpop.xlane.xlu0 %1728
        %v1730 = vmul.f32 %v1729, %v1547
        %v1731 = vsub.f32 %v1724, %v1730
        %v1732 = vmul.f32 %v1731, %v1731
        %v1733 = vsel %vm986, %v1732, 0.0
        %1734 = vadd.xlane.f32.xlu0 %v1733
        %v1735 = vpop.xlane.xlu0 %1734
        %v1736 = vmul.f32 %v1735, %v1547
        %v1737 = vadd.f32 %v1736, 1e-05
        %v1738 = vrsqrt.pop %v1737
        %v1739 = vmul.f32 %v1731, %v1738
        %v1741 = vlaneseq
        %v1742 = vshrl.u32 %v1741, 7
        %v1743 = vsub.s32 0, %v1742
        %v1744 = vrot.slane %v1725, %v1743
        %v1746 = vmul.f32 %v1739, %v1744
        %v1748 = vlaneseq
        %v1749 = vshrl.u32 %v1748, 7
        %v1750 = vsub.s32 0, %v1749
        %v1751 = vrot.slane %v1726, %v1750
        %v1753 = vadd.f32 %v1746, %v1751
        %1754 = vst.msk [vmem:[%s745] sm:$0xff] %vm986, %v1753
        %s1755 = sand.u32 %s492, 1
        %s1756 = scalar_lea.sflag [#allocation6], %s1755
        %s1757 = sand.u32 %s492, 1
        %s1758 = smul.addr %s1757, 8
        %s1759 = scalar_lea.vmem [#allocation15], %s1758
        // Predicated region
        $region129: #{tpu_custom_call.1} parent=99 // pred_check
          %p1760 = pneg %p502
        $region130: #{tpu_custom_call.1} parent=99 // pred_check_branch
          %1762 = sbr.rel (%p1760) target = $region132
        $region131: #{tpu_custom_call.1} parent=99 // pred_region
          %s1764 = ssub.s32 128, 128
          %1765 = vsyncadd %s1756, %s1764
          %s1766 = smul.addr %s44, 2
          %s1767 = sadd.s32 %s45, %s1766
          %s1768 = smul.addr %s1767, 128
          %s1769 = scalar_lea.hbm %s20, %s1768
          %s1771 = sshll.u32 %s1759, 4
          %s1772 = int_to_ptr.vmem [resolvable:$true] %s1771
          %1774 = dma.vmem_to_hbm [thread:$0]  %s1772, 128, %s1769, %s1756
        $region132: #{tpu_custom_call.1} parent=99 // pred_fallthru
          _
      $region100: #{tpu_custom_call.1} parent=5 // pred_fallthru
        _
      %p1775 = scmp.le.s32.totalorder 2, %s35
      // Predicated region
      $region133: #{tpu_custom_call.1} parent=5 // pred_check
        %p1776 = pneg %p1775
      $region134: #{tpu_custom_call.1} parent=5 // pred_check_branch
        %1778 = sbr.rel (%p1776) target = $region136
      $region135: #{tpu_custom_call.1} parent=5 // pred_region
        %s1779 = ssub.s32 %s35, 2
        // Predicated region
        $region137: #{tpu_custom_call.1} parent=135 // pred_check
          %p1780 = pneg %p508
        $region138: #{tpu_custom_call.1} parent=135 // pred_check_branch
          %1782 = sbr.rel (%p1780) target = $region140
        $region139: #{tpu_custom_call.1} parent=135 // pred_region
          %s1783 = sand.u32 %s493, 1
          %s1784 = scalar_lea.sflag [#allocation6], %s1783
          %s1785 = sand.u32 %s493, 1
          %s1786 = smul.addr %s1785, 8
          %s1787 = scalar_lea.vmem [#allocation15], %s1786
          %1788 = dma.done %s1784, 128
        $region140: #{tpu_custom_call.1} parent=135 // pred_fallthru
          _
      $region136: #{tpu_custom_call.1} parent=5 // pred_fallthru
        _
    $region6: #{tpu_custom_call.1} parent=1 // loop_footer
      %s39 = sadd.s32 1, %s35
    $region7: #{tpu_custom_call.1} parent=1 // loop_footer_branch
      %34 = sbr.rel target = $region3
    $region8: #{tpu_custom_call.1} parent=1 // loop_exit
      _
    %1789 = vsyncpa [#allocation5], 1
    %s1790 = scalar_lea.sflag [#allocation5], 1
    %1791 = vsyncpa %s1790, 1
    %1792 = vsyncpa [#allocation8], 1
    %1793 = vsyncpa [#allocation11], 1
    %1794 = vsyncpa [#allocation14], 1
    %1795 = vsyncpa [#allocation6], 1
    %s1796 = scalar_lea.sflag [#allocation6], 1
    %1797 = vsyncpa %s1796, 1

</llo_original>
